<compile_context>
chip_gen: v5e
topology: v5e:2x2
jax: 0.10.0
libtpu: 0.0.40
codegen_flags: <defaults>
</compile_context>

<pallas_src>
import jax
import jax.numpy as jnp
import numpy as np
from jax.experimental import pallas as pl
from jax.experimental.pallas import tpu as pltpu


# ----------------------------------------------------------------------------
# Tile selection helpers
# ----------------------------------------------------------------------------
def _choose_tile(dim, preferred, multiple):
    """Largest tile <= preferred that is a multiple of `multiple` and divides dim,
    falling back to the full dimension (full-dim blocks are always legal)."""
    if dim <= preferred:
        return dim
    t = (preferred // multiple) * multiple
    while t >= multiple:
        if dim % t == 0:
            return t
        t -= multiple
    return dim


def _pick_coarse_tiles(hw0, hw1):
    # Lane dim first (must be a multiple of 128 or the full dim).
    tn = _choose_tile(hw1, 512, 128)
    # Per-tile footprint: 13 B/elem of inputs (double-buffered -> 26) + 16 B/elem of
    # f32 scratch accumulators ~= 42 B/elem.  512*512 elems ~= 11 MB, comfortably
    # inside even v5e's 16 MiB default scoped VMEM and v7x's 64 MiB physical VMEM.
    budget_elems = 512 * 512
    tm_pref = max(32, min(256, (budget_elems // max(tn, 1)) // 32 * 32))
    tm = _choose_tile(hw0, tm_pref, 32)
    return tm, tn


def _scalar_tile_8x128(values):
    """Place scalars values[k] at positions (0, k) of an (8, 128) f32 tile."""
    r = jax.lax.broadcasted_iota(jnp.int32, (8, 128), 0)
    c = jax.lax.broadcasted_iota(jnp.int32, (8, 128), 1)
    tile = jnp.zeros((8, 128), jnp.float32)
    for k, v in enumerate(values):
        tile = jnp.where((r == 0) & (c == k), v, tile)
    return tile


# ----------------------------------------------------------------------------
# Coarse-loss kernel: per-batch partial sums of the focal/CE terms
# ----------------------------------------------------------------------------
def _make_coarse_kernel(alpha, c_pos_w):
    alpha = float(alpha)
    c_pos_w = float(c_pos_w)
    fuse_pos_logs = (c_pos_w == 1.0)   # log(a)+log(b) == log(a*b): one EUP op saved

    def kernel(conf_ref, topic_ref, gt_ref, neg_ref, m0_ref, m1_ref, out_ref,
               acc_pos, acc_neg, acc_pcnt, acc_ncnt):
        i = pl.program_id(1)
        j = pl.program_id(2)

        @pl.when((i == 0) & (j == 0))
        def _init():
            acc_pos[...] = jnp.zeros_like(acc_pos)
            acc_neg[...] = jnp.zeros_like(acc_neg)
            acc_pcnt[...] = jnp.zeros_like(acc_pcnt)
            acc_ncnt[...] = jnp.zeros_like(acc_ncnt)

        # Upcast after the (narrow-dtype) load; compute in f32.
        conf = jnp.clip(conf_ref[0].astype(jnp.float32), 1e-6, 1.0 - 1e-6)   # (TM, TN)
        topic = topic_ref[0].astype(jnp.float32)                             # (TM, TN)
        pos = (gt_ref[0] > 0.5).astype(jnp.float32)                          # 0/1 float gt
        neg = neg_ref[0].astype(jnp.float32)                                 # 0/1 int8 -> f32
        w = m0_ref[0] * m1_ref[0]                                            # (TM,1)*(1,TN)

        pw = pos * w
        if fuse_pos_logs:
            # Positive topic focal term + pos-weighted positive conf term share one log.
            pos_log = jnp.log((topic + 1e-6) * conf)
        else:
            pos_log = jnp.log(topic + 1e-6) + c_pos_w * jnp.log(conf)
        acc_pos[...] += pw * (-alpha) * pos_log
        acc_neg[...] += (neg * w) * (-alpha) * jnp.log(1.0 - topic + 1e-6)
        acc_pcnt[...] += pos
        acc_ncnt[...] += neg

        @pl.when((i == pl.num_programs(1) - 1) & (j == pl.num_programs(2) - 1))
        def _flush():
            out_ref[0] = _scalar_tile_8x128([
                jnp.sum(acc_pos[...]),
                jnp.sum(acc_neg[...]),
                jnp.sum(acc_pcnt[...]),
                jnp.sum(acc_ncnt[...]),
            ])

    return kernel


def coarse_loss_partials(conf, topic, gt, neg_i8, mask0_col, mask1_row,
                         alpha, c_pos_w):
    """Returns f32 (N, 8, 128) with per-batch partials at [:, 0, 0:4] =
    [pos_combined_sum, neg_topic_sum, pos_cnt, neg_cnt]."""
    N, HW0, HW1 = conf.shape
    TM, TN = _pick_coarse_tiles(HW0, HW1)
    n_i, n_j = HW0 // TM, HW1 // TN

    big = lambda b, i, j: (b, i, j)
    return pl.pallas_call(
        _make_coarse_kernel(alpha, c_pos_w),
        out_shape=jax.ShapeDtypeStruct((N, 8, 128), jnp.float32),
        grid=(N, n_i, n_j),
        in_specs=[
            pl.BlockSpec((1, TM, TN), big),                        # conf   (native dtype)
            pl.BlockSpec((1, TM, TN), big),                        # topic  (native dtype)
            pl.BlockSpec((1, TM, TN), big),                        # gt     (native float dtype)
            pl.BlockSpec((1, TM, TN), big),                        # neg    int8
            pl.BlockSpec((1, TM, 1), lambda b, i, j: (b, i, 0)),   # mask0 column
            pl.BlockSpec((1, 1, TN), lambda b, i, j: (b, 0, j)),   # mask1 row
        ],
        out_specs=pl.BlockSpec((1, 8, 128), lambda b, i, j: (b, 0, 0)),
        scratch_shapes=[pltpu.VMEM((TM, TN), jnp.float32)] * 4,
        compiler_params=pltpu.CompilerParams(
            dimension_semantics=("parallel", "arbitrary", "arbitrary")),
    )(conf, topic, gt, neg_i8, mask0_col, mask1_row)


# ----------------------------------------------------------------------------
# 'ce' segmentation-loss kernels (feat0 and feat1 fused; no HBM concat copy)
# ----------------------------------------------------------------------------
def _seg_flush(out_ref, acc_ref):
    out_ref[0] = _scalar_tile_8x128([jnp.sum(acc_ref[...])])


def _seg_pair_kernel(f0_ref, m0_ref, f1_ref, m1_ref, out_ref, acc_ref):
    l = pl.program_id(1)

    @pl.when(l == 0)
    def _init():
        acc_ref[...] = jnp.zeros_like(acc_ref)

    f0 = f0_ref[0].astype(jnp.float32)         # (TL, C)
    m0 = m0_ref[0].astype(jnp.float32)         # (TL, 1)
    f1 = f1_ref[0].astype(jnp.float32)
    m1 = m1_ref[0].astype(jnp.float32)
    # gt_feat * log(pred_feat); clamp avoids 0*log(0)=NaN on softmax underflow
    # (identical result for f > 0).
    acc_ref[...] += (m0 * f0 * jnp.log(jnp.maximum(f0, 1e-12))
                     + m1 * f1 * jnp.log(jnp.maximum(f1, 1e-12)))

    @pl.when(l == pl.num_programs(1) - 1)
    def _flush():
        _seg_flush(out_ref, acc_ref)


def _seg_single_kernel(f_ref, m_ref, out_ref, acc_ref):
    l = pl.program_id(1)

    @pl.when(l == 0)
    def _init():
        acc_ref[...] = jnp.zeros_like(acc_ref)

    f = f_ref[0].astype(jnp.float32)
    m = m_ref[0].astype(jnp.float32)
    acc_ref[...] += m * f * jnp.log(jnp.maximum(f, 1e-12))

    @pl.when(l == pl.num_programs(1) - 1)
    def _flush():
        _seg_flush(out_ref, acc_ref)


def _seg_single_partials(feat, mask):
    N, L, C = feat.shape
    TL = _choose_tile(L, 512, 8)
    return pl.pallas_call(
        _seg_single_kernel,
        out_shape=jax.ShapeDtypeStruct((N, 8, 128), jnp.float32),
        grid=(N, L // TL),
        in_specs=[
            pl.BlockSpec((1, TL, C), lambda b, l: (b, l, 0)),
            pl.BlockSpec((1, TL, 1), lambda b, l: (b, l, 0)),
        ],
        out_specs=pl.BlockSpec((1, 8, 128), lambda b, l: (b, 0, 0)),
        scratch_shapes=[pltpu.VMEM((TL, C), jnp.float32)],
        compiler_params=pltpu.CompilerParams(
            dimension_semantics=("parallel", "arbitrary")),
    )(feat, mask.astype(jnp.float32))


def _seg_pair_partials(feat0, mask0, feat1, mask1):
    N, L, C = feat0.shape
    TL = _choose_tile(L, 512, 8)
    return pl.pallas_call(
        _seg_pair_kernel,
        out_shape=jax.ShapeDtypeStruct((N, 8, 128), jnp.float32),
        grid=(N, L // TL),
        in_specs=[
            pl.BlockSpec((1, TL, C), lambda b, l: (b, l, 0)),
            pl.BlockSpec((1, TL, 1), lambda b, l: (b, l, 0)),
            pl.BlockSpec((1, TL, C), lambda b, l: (b, l, 0)),
            pl.BlockSpec((1, TL, 1), lambda b, l: (b, l, 0)),
        ],
        out_specs=pl.BlockSpec((1, 8, 128), lambda b, l: (b, 0, 0)),
        scratch_shapes=[pltpu.VMEM((TL, C), jnp.float32)],
        compiler_params=pltpu.CompilerParams(
            dimension_semantics=("parallel", "arbitrary")),
    )(feat0, mask0.astype(jnp.float32), feat1, mask1.astype(jnp.float32))


def seg_ce_loss(feat0, mask0, feat1, mask1):
    """'ce' loss for both feature maps: sum_i mean_{n,c}( -sum_l gt_i * log(pred_i) )."""
    N, L0, C0 = feat0.shape
    _, L1, C1 = feat1.shape
    if (L0, C0) == (L1, C1):
        parts = _seg_pair_partials(feat0, mask0, feat1, mask1)
        return -jnp.sum(parts[:, 0, 0]) / (N * C0)
    s0 = -jnp.sum(_seg_single_partials(feat0, mask0)[:, 0, 0]) / (N * C0)
    s1 = -jnp.sum(_seg_single_partials(feat1, mask1)[:, 0, 0]) / (N * C1)
    return s0 + s1


# ----------------------------------------------------------------------------
# Plain-JAX glue (random negative sampling + tiny fine loss)
# ----------------------------------------------------------------------------
def sample_non_matches(pos_mask, match_ids, key, sampling_ratio=10):
    # TODO(synk): torch.multinomial over uniform probs == uniform randint; reproduced
    # with jax.random (deterministic under PRNGKey); scatter kept in plain JAX.
    b_ids, i_ids, j_ids = match_ids
    HW = pos_mask.shape[1]
    if b_ids.shape[0] == 0:
        return ~pos_mask
    neg_mask = jnp.zeros_like(pos_mask)
    n_buckets = (HW - 1) // 3
    for t in range(sampling_ratio):
        d = jax.random.randint(jax.random.fold_in(key, t), (j_ids.shape[0],), 0, n_buckets)
        sampled_j = (j_ids + d * 3 + 1) % HW
        neg_mask = neg_mask.at[b_ids, i_ids, sampled_j].set(True)
    return neg_mask


def fine_loss_l2_std(expec_f, expec_f_gt, thr):
    # tiny [M, 3] / [M, 2] computation -> plain JAX (not a hot path)
    correct = jnp.max(jnp.abs(expec_f_gt), axis=1) < thr
    std = expec_f[:, 2]
    inv_std = 1.0 / jnp.maximum(std, 1e-10)
    weight = inv_std / jnp.mean(inv_std)
    has = jnp.any(correct)
    correct = correct.at[0].set(jnp.where(has, correct[0], True))   # training fallback
    weight = weight.at[0].set(jnp.where(has, weight[0], 0.0))
    offset_l2 = jnp.sum((expec_f_gt - expec_f[:, :2]) ** 2, axis=-1)
    cf = correct.astype(jnp.float32)
    return jnp.sum(offset_l2 * weight * cf) / jnp.maximum(jnp.sum(cf), 1.0)


# ----------------------------------------------------------------------------
# TopicFMLoss.forward
# ----------------------------------------------------------------------------
def topicfm_loss_forward(data, loss_cfg, neg_mask):
    alpha = loss_cfg["focal_alpha"]
    c_pos_w = loss_cfg["pos_weight"]
    feat_w = loss_cfg.get("feat_weight", 1.0)

    conf = data["conf_matrix"]
    topic = data["topic_matrix"]
    N, HW0, HW1 = conf.shape

    mask0_col = data["mask0"].reshape(N, HW0, 1).astype(jnp.float32)
    mask1_row = data["mask1"].reshape(N, 1, HW1).astype(jnp.float32)
    gt = data["conf_matrix_gt"]              # thresholded (>0.5) inside the kernel
    neg_i8 = neg_mask.astype(jnp.int8)

    parts = coarse_loss_partials(conf, topic, gt, neg_i8,
                                 mask0_col, mask1_row, alpha, c_pos_w)
    pos_sum = jnp.sum(parts[:, 0, 0])   # pos topic + c_pos_w * pos conf (weighted)
    neg_sum = jnp.sum(parts[:, 0, 1])   # neg topic (weighted)
    pos_cnt = jnp.sum(parts[:, 0, 2])
    neg_cnt = jnp.sum(parts[:, 0, 3])

    has_pos = pos_cnt > 0
    has_neg = neg_cnt > 0
    # fallback semantics: fake match gets weight 0 and c_pos_w 0 -> terms vanish
    pos_term = jnp.where(has_pos, pos_sum / jnp.maximum(pos_cnt, 1.0), 0.0)
    neg_term = jnp.where(has_neg, neg_sum / jnp.maximum(neg_cnt, 1.0), 0.0)

    seg_loss = seg_ce_loss(data["feat0"], data["conf_mask0_gt"],
                           data["feat1"], data["conf_mask1_gt"])

    loss_c = pos_term + neg_term + seg_loss * feat_w
    loss_f = fine_loss_l2_std(data["expec_f"], data["expec_f_gt"],
                              loss_cfg["fine_correct_thr"])
    loss = loss_c * loss_cfg["coarse_weight"] + loss_f * loss_cfg["fine_weight"]
    scalars = {"loss_c": loss_c, "loss_f": loss_f, "loss": loss}
    return loss, scalars


# ----------------------------------------------------------------------------
# Pure-JAX reference (same math, no Pallas) for a correctness check
# ----------------------------------------------------------------------------
def reference_forward(data, loss_cfg, neg_mask):
    alpha = loss_cfg["focal_alpha"]
    N = data["conf_matrix"].shape[0]
    pos = (data["conf_matrix_gt"] > 0.5).astype(jnp.float32)
    neg = neg_mask.astype(jnp.float32)
    m0 = data["mask0"].reshape(N, -1).astype(jnp.float32)
    m1 = data["mask1"].reshape(N, -1).astype(jnp.float32)
    w = m0[:, :, None] * m1[:, None, :]
    conf = jnp.clip(data["conf_matrix"].astype(jnp.float32), 1e-6, 1 - 1e-6)
    topic = data["topic_matrix"].astype(jnp.float32)
    pos_cnt = jnp.sum(pos)
    neg_cnt = jnp.sum(neg)
    pos_topic = jnp.sum(pos * w * (-alpha * jnp.log(topic + 1e-6))) / pos_cnt
    neg_topic = jnp.sum(neg * w * (-alpha * jnp.log(1 - topic + 1e-6))) / neg_cnt
    conf_term = loss_cfg["pos_weight"] * jnp.sum(pos * w * (-alpha * jnp.log(conf))) / pos_cnt

    def seg(feat, mask):
        gt = feat * mask
        return jnp.mean(-jnp.sum(gt * jnp.log(feat), axis=1))

    seg_loss = seg(data["feat0"], data["conf_mask0_gt"]) + seg(data["feat1"], data["conf_mask1_gt"])
    loss_c = pos_topic + neg_topic + seg_loss * loss_cfg["feat_weight"] + conf_term
    loss_f = fine_loss_l2_std(data["expec_f"], data["expec_f_gt"], loss_cfg["fine_correct_thr"])
    return loss_c * loss_cfg["coarse_weight"] + loss_f * loss_cfg["fine_weight"]


# ----------------------------------------------------------------------------
# main
# ----------------------------------------------------------------------------
if __name__ == "__main__":
    loss_cfg = {
        "pos_weight": 1.0,
        "neg_weight": 1.0,
        "focal_alpha": 0.25,
        "fine_correct_thr": 1.0,
        "fine_type": "l2_with_std",
        "segmentation_loss": "ce",
        "feat_weight": 1.0,
        "coarse_weight": 1.0,
        "fine_weight": 1.0,
    }

    # Lane-dense demo shapes: HW = 128 so the coarse tiles are full (128, 128) vregs.
    N, H, W, C, M = 2, 8, 16, 128, 8
    HW = H * W
    n_match = 12

    key = jax.random.PRNGKey(0)
    ks = jax.random.split(key, 14)

    conf_matrix = jax.random.uniform(ks[0], (N, HW, HW), jnp.float32, 0.01, 0.99)
    topic_matrix = jax.random.uniform(ks[1], (N, HW, HW), jnp.float32, 0.01, 0.99)

    spv_b_ids = jax.random.randint(ks[2], (n_match,), 0, N)
    spv_i_ids = jax.random.randint(ks[3], (n_match,), 0, HW)
    spv_j_ids = jax.random.randint(ks[4], (n_match,), 0, HW)
    conf_matrix_gt = jnp.zeros((N, HW, HW), jnp.float32).at[spv_b_ids, spv_i_ids, spv_j_ids].set(1.0)

    mask0 = (jax.random.uniform(ks[5], (N, H, W)) > 0.1).astype(jnp.float32)
    mask1 = (jax.random.uniform(ks[6], (N, H, W)) > 0.1).astype(jnp.float32)

    feat0 = jax.random.uniform(ks[7], (N, HW, C), jnp.float32, 0.05, 0.95)
    feat1 = jax.random.uniform(ks[8], (N, HW, C), jnp.float32, 0.05, 0.95)
    conf_mask0_gt = (jax.random.uniform(ks[9], (N, HW, 1)) > 0.5).astype(jnp.float32)
    conf_mask1_gt = (jax.random.uniform(ks[10], (N, HW, 1)) > 0.5).astype(jnp.float32)

    expec_f = jnp.concatenate(
        [jax.random.uniform(ks[11], (M, 2), jnp.float32, -0.4, 0.4),
         jax.random.uniform(ks[12], (M, 1), jnp.float32, 0.5, 1.5)], axis=1)
    expec_f_gt = jax.random.uniform(ks[13], (M, 2), jnp.float32, -0.8, 0.8)

    data = {
        "conf_matrix": conf_matrix,
        "topic_matrix": topic_matrix,
        "conf_matrix_gt": conf_matrix_gt,
        "spv_b_ids": spv_b_ids,
        "spv_i_ids": spv_i_ids,
        "spv_j_ids": spv_j_ids,
        "mask0": mask0,
        "mask1": mask1,
        "feat0": feat0,
        "feat1": feat1,
        "conf_mask0_gt": conf_mask0_gt,
        "conf_mask1_gt": conf_mask1_gt,
        "expec_f": expec_f,
        "expec_f_gt": expec_f_gt,
    }

    # negative sampling (shared by kernel path and reference so they match)
    pos_mask = conf_matrix_gt == 1
    neg_mask = sample_non_matches(
        pos_mask, (spv_b_ids, spv_i_ids, spv_j_ids), key=jax.random.PRNGKey(123), sampling_ratio=10)

    loss, scalars = topicfm_loss_forward(data, loss_cfg, neg_mask)
    loss = jax.block_until_ready(loss)

    ref = jax.block_until_ready(reference_forward(data, loss_cfg, neg_mask))
    np.testing.assert_allclose(float(loss), float(ref), rtol=2e-3, atol=1e-5)

    print("KERNEL_OK")
</pallas_src>

<mosaic_0001>
module attributes {stable_mosaic.version = 11 : i64} {
  func.func @kernel(%arg0: i32, %arg1: i32, %arg2: i32, %arg3: memref<1x128x128xf32, #tpu.memory_space<vmem>>, %arg4: memref<1x128x128xf32, #tpu.memory_space<vmem>>, %arg5: memref<1x128x128xf32, #tpu.memory_space<vmem>>, %arg6: memref<1x128x128xi8, #tpu.memory_space<vmem>>, %arg7: memref<1x128x1xf32, #tpu.memory_space<vmem>>, %arg8: memref<1x1x128xf32, #tpu.memory_space<vmem>>, %arg9: memref<1x8x128xf32, #tpu.memory_space<vmem>>, %arg10: memref<128x128xf32, #tpu.memory_space<vmem>>, %arg11: memref<128x128xf32, #tpu.memory_space<vmem>>, %arg12: memref<128x128xf32, #tpu.memory_space<vmem>>, %arg13: memref<128x128xf32, #tpu.memory_space<vmem>>) attributes {dimension_semantics = [#tpu.dimension_semantics<parallel>, #tpu.dimension_semantics<arbitrary>, #tpu.dimension_semantics<arbitrary>], iteration_bounds = array<i64: 2, 1, 1>, scalar_prefetch = 0 : i64, scratch_operands = 4 : i64, tpu.core_type = #tpu.core_type<tc>, window_params = [{transform_indices = @transform_0, window_bounds = array<i64: 1, 128, 128>}, {transform_indices = @transform_1, window_bounds = array<i64: 1, 128, 128>}, {transform_indices = @transform_2, window_bounds = array<i64: 1, 128, 128>}, {transform_indices = @transform_3, window_bounds = array<i64: 1, 128, 128>}, {transform_indices = @transform_4, window_bounds = array<i64: 1, 128, 1>}, {transform_indices = @transform_5, window_bounds = array<i64: 1, 1, 128>}, {transform_indices = @transform_6, window_bounds = array<i64: 1, 8, 128>}]} {
    %c0_i32 = arith.constant 0 : i32
    %0 = arith.cmpi eq, %arg1, %c0_i32 : i32
    %c0_i32_0 = arith.constant 0 : i32
    %1 = arith.cmpi eq, %arg2, %c0_i32_0 : i32
    %2 = arith.andi %0, %1 : i1
    %3 = arith.extui %2 : i1 to i32
    %c0_i32_1 = arith.constant 0 : i32
    %4 = arith.cmpi ne, %3, %c0_i32_1 : i32
    scf.if %4 {
      %cst_45 = arith.constant 0.000000e+00 : f32
      %63 = vector.broadcast %cst_45 : f32 to vector<128x128xf32>
      %c0_46 = arith.constant 0 : index
      %c0_47 = arith.constant 0 : index
      %64 = vector.load %arg10[%c0_46, %c0_47] : memref<128x128xf32, #tpu.memory_space<vmem>>, vector<128x128xf32>
      tpu.vector_store %arg10[%c0_46, %c0_47], %63 {strides = array<i32>} : memref<128x128xf32, #tpu.memory_space<vmem>>, vector<128x128xf32>,
      %cst_48 = arith.constant 0.000000e+00 : f32
      %65 = vector.broadcast %cst_48 : f32 to vector<128x128xf32>
      %c0_49 = arith.constant 0 : index
      %c0_50 = arith.constant 0 : index
      %66 = vector.load %arg11[%c0_49, %c0_50] : memref<128x128xf32, #tpu.memory_space<vmem>>, vector<128x128xf32>
      tpu.vector_store %arg11[%c0_49, %c0_50], %65 {strides = array<i32>} : memref<128x128xf32, #tpu.memory_space<vmem>>, vector<128x128xf32>,
      %cst_51 = arith.constant 0.000000e+00 : f32
      %67 = vector.broadcast %cst_51 : f32 to vector<128x128xf32>
      %c0_52 = arith.constant 0 : index
      %c0_53 = arith.constant 0 : index
      %68 = vector.load %arg12[%c0_52, %c0_53] : memref<128x128xf32, #tpu.memory_space<vmem>>, vector<128x128xf32>
      tpu.vector_store %arg12[%c0_52, %c0_53], %67 {strides = array<i32>} : memref<128x128xf32, #tpu.memory_space<vmem>>, vector<128x128xf32>,
      %cst_54 = arith.constant 0.000000e+00 : f32
      %69 = vector.broadcast %cst_54 : f32 to vector<128x128xf32>
      %c0_55 = arith.constant 0 : index
      %c0_56 = arith.constant 0 : index
      %70 = vector.load %arg13[%c0_55, %c0_56] : memref<128x128xf32, #tpu.memory_space<vmem>>, vector<128x128xf32>
      tpu.vector_store %arg13[%c0_55, %c0_56], %69 {strides = array<i32>} : memref<128x128xf32, #tpu.memory_space<vmem>>, vector<128x128xf32>,
    } else {
    }
    %c0 = arith.constant 0 : index
    %c0_2 = arith.constant 0 : index
    %c0_3 = arith.constant 0 : index
    %5 = vector.load %arg3[%c0, %c0_2, %c0_3] : memref<1x128x128xf32, #tpu.memory_space<vmem>>, vector<1x128x128xf32>
    %6 = vector.shape_cast %5 : vector<1x128x128xf32> to vector<128x128xf32>
    %cst = arith.constant 9.99999997E-7 : f32
    %cst_4 = arith.constant 0.999998986 : f32
    %7 = vector.broadcast %cst : f32 to vector<128x128xf32>
    %8 = arith.maximumf %7, %6 : vector<128x128xf32>
    %9 = vector.broadcast %cst_4 : f32 to vector<128x128xf32>
    %10 = arith.minimumf %9, %8 : vector<128x128xf32>
    %c0_5 = arith.constant 0 : index
    %c0_6 = arith.constant 0 : index
    %c0_7 = arith.constant 0 : index
    %11 = vector.load %arg4[%c0_5, %c0_6, %c0_7] : memref<1x128x128xf32, #tpu.memory_space<vmem>>, vector<1x128x128xf32>
    %12 = vector.shape_cast %11 : vector<1x128x128xf32> to vector<128x128xf32>
    %c0_8 = arith.constant 0 : index
    %c0_9 = arith.constant 0 : index
    %c0_10 = arith.constant 0 : index
    %13 = vector.load %arg5[%c0_8, %c0_9, %c0_10] : memref<1x128x128xf32, #tpu.memory_space<vmem>>, vector<1x128x128xf32>
    %14 = vector.shape_cast %13 : vector<1x128x128xf32> to vector<128x128xf32>
    %cst_11 = arith.constant 5.000000e-01 : f32
    %15 = vector.broadcast %cst_11 : f32 to vector<128x128xf32>
    %16 = arith.cmpf ogt, %14, %15 : vector<128x128xf32>
    %17 = arith.extui %16 : vector<128x128xi1> to vector<128x128xi32>
    %18 = arith.sitofp %17 : vector<128x128xi32> to vector<128x128xf32>
    %c0_12 = arith.constant 0 : index
    %c0_13 = arith.constant 0 : index
    %c0_14 = arith.constant 0 : index
    %19 = vector.load %arg6[%c0_12, %c0_13, %c0_14] : memref<1x128x128xi8, #tpu.memory_space<vmem>>, vector<1x128x128xi8>
    %20 = vector.shape_cast %19 : vector<1x128x128xi8> to vector<128x128xi8>
    %21 = arith.sitofp %20 : vector<128x128xi8> to vector<128x128xf32>
    %c0_15 = arith.constant 0 : index
    %c0_16 = arith.constant 0 : index
    %c0_17 = arith.constant 0 : index
    %22 = vector.load %arg7[%c0_15, %c0_16, %c0_17] : memref<1x128x1xf32, #tpu.memory_space<vmem>>, vector<1x128x1xf32>
    %23 = vector.shape_cast %22 : vector<1x128x1xf32> to vector<128x1xf32>
    %c0_18 = arith.constant 0 : index
    %c0_19 = arith.constant 0 : index
    %c0_20 = arith.constant 0 : index
    %24 = vector.load %arg8[%c0_18, %c0_19, %c0_20] : memref<1x1x128xf32, #tpu.memory_space<vmem>>, vector<1x1x128xf32>
    %25 = vector.shape_cast %24 : vector<1x1x128xf32> to vector<1x128xf32>
    %26 = vector.broadcast %23 : vector<128x1xf32> to vector<128x128xf32>
    %27 = vector.broadcast %25 : vector<1x128xf32> to vector<128x128xf32>
    %28 = arith.mulf %26, %27 : vector<128x128xf32>
    %29 = arith.mulf %18, %28 : vector<128x128xf32>
    %cst_21 = arith.constant 9.99999997E-7 : f32
    %30 = vector.broadcast %cst_21 : f32 to vector<128x128xf32>
    %31 = arith.addf %12, %30 : vector<128x128xf32>
    %32 = arith.mulf %31, %10 : vector<128x128xf32>
    %33 = math.log %32 : vector<128x128xf32>
    %c0_22 = arith.constant 0 : index
    %c0_23 = arith.constant 0 : index
    %34 = vector.load %arg10[%c0_22, %c0_23] : memref<128x128xf32, #tpu.memory_space<vmem>>, vector<128x128xf32>
    %cst_24 = arith.constant -2.500000e-01 : f32
    %35 = vector.broadcast %cst_24 : f32 to vector<128x128xf32>
    %36 = arith.mulf %29, %35 : vector<128x128xf32>
    %37 = arith.mulf %36, %33 : vector<128x128xf32>
    %38 = arith.addf %34, %37 : vector<128x128xf32>
    %c0_25 = arith.constant 0 : index
    %c0_26 = arith.constant 0 : index
    %39 = vector.load %arg10[%c0_25, %c0_26] : memref<128x128xf32, #tpu.memory_space<vmem>>, vector<128x128xf32>
    tpu.vector_store %arg10[%c0_25, %c0_26], %38 {strides = array<i32>} : memref<128x128xf32, #tpu.memory_space<vmem>>, vector<128x128xf32>,
    %c0_27 = arith.constant 0 : index
    %c0_28 = arith.constant 0 : index
    %40 = vector.load %arg11[%c0_27, %c0_28] : memref<128x128xf32, #tpu.memory_space<vmem>>, vector<128x128xf32>
    %41 = arith.mulf %21, %28 : vector<128x128xf32>
    %cst_29 = arith.constant -2.500000e-01 : f32
    %42 = vector.broadcast %cst_29 : f32 to vector<128x128xf32>
    %43 = arith.mulf %41, %42 : vector<128x128xf32>
    %cst_30 = arith.constant 1.000000e+00 : f32
    %44 = vector.broadcast %cst_30 : f32 to vector<128x128xf32>
    %45 = arith.subf %44, %12 : vector<128x128xf32>
    %cst_31 = arith.constant 9.99999997E-7 : f32
    %46 = vector.broadcast %cst_31 : f32 to vector<128x128xf32>
    %47 = arith.addf %45, %46 : vector<128x128xf32>
    %48 = math.log %47 : vector<128x128xf32>
    %49 = arith.mulf %43, %48 : vector<128x128xf32>
    %50 = arith.addf %40, %49 : vector<128x128xf32>
    %c0_32 = arith.constant 0 : index
    %c0_33 = arith.constant 0 : index
    %51 = vector.load %arg11[%c0_32, %c0_33] : memref<128x128xf32, #tpu.memory_space<vmem>>, vector<128x128xf32>
    tpu.vector_store %arg11[%c0_32, %c0_33], %50 {strides = array<i32>} : memref<128x128xf32, #tpu.memory_space<vmem>>, vector<128x128xf32>,
    %c0_34 = arith.constant 0 : index
    %c0_35 = arith.constant 0 : index
    %52 = vector.load %arg12[%c0_34, %c0_35] : memref<128x128xf32, #tpu.memory_space<vmem>>, vector<128x128xf32>
    %53 = arith.addf %52, %18 : vector<128x128xf32>
    %c0_36 = arith.constant 0 : index
    %c0_37 = arith.constant 0 : index
    %54 = vector.load %arg12[%c0_36, %c0_37] : memref<128x128xf32, #tpu.memory_space<vmem>>, vector<128x128xf32>
    tpu.vector_store %arg12[%c0_36, %c0_37], %53 {strides = array<i32>} : memref<128x128xf32, #tpu.memory_space<vmem>>, vector<128x128xf32>,
    %c0_38 = arith.constant 0 : index
    %c0_39 = arith.constant 0 : index
    %55 = vector.load %arg13[%c0_38, %c0_39] : memref<128x128xf32, #tpu.memory_space<vmem>>, vector<128x128xf32>
    %56 = arith.addf %55, %21 : vector<128x128xf32>
    %c0_40 = arith.constant 0 : index
    %c0_41 = arith.constant 0 : index
    %57 = vector.load %arg13[%c0_40, %c0_41] : memref<128x128xf32, #tpu.memory_space<vmem>>, vector<128x128xf32>
    tpu.vector_store %arg13[%c0_40, %c0_41], %56 {strides = array<i32>} : memref<128x128xf32, #tpu.memory_space<vmem>>, vector<128x128xf32>,
    %c0_i32_42 = arith.constant 0 : i32
    %58 = arith.cmpi eq, %arg1, %c0_i32_42 : i32
    %c0_i32_43 = arith.constant 0 : i32
    %59 = arith.cmpi eq, %arg2, %c0_i32_43 : i32
    %60 = arith.andi %58, %59 : i1
    %61 = arith.extui %60 : i1 to i32
    %c0_i32_44 = arith.constant 0 : i32
    %62 = arith.cmpi ne, %61, %c0_i32_44 : i32
    scf.if %62 {
      %c0_45 = arith.constant 0 : index
      %c0_46 = arith.constant 0 : index
      %63 = vector.load %arg10[%c0_45, %c0_46] : memref<128x128xf32, #tpu.memory_space<vmem>>, vector<128x128xf32>
      %64 = vector.shape_cast %63 : vector<128x128xf32> to vector<1x128x128xf32>
      %cst_47 = arith.constant dense<0.000000e+00> : vector<1xf32>
      %65 = vector.multi_reduction <add>, %64, %cst_47 [1, 2] : vector<1x128x128xf32> to vector<1xf32>
      %66 = vector.shape_cast %65 : vector<1xf32> to vector<1x1x1xf32>
      %67 = vector.extract %66[0, 0, 0] : f32 from vector<1x1x1xf32>
      %c0_48 = arith.constant 0 : index
      %c0_49 = arith.constant 0 : index
      %68 = vector.load %arg11[%c0_48, %c0_49] : memref<128x128xf32, #tpu.memory_space<vmem>>, vector<128x128xf32>
      %69 = vector.shape_cast %68 : vector<128x128xf32> to vector<1x128x128xf32>
      %cst_50 = arith.constant dense<0.000000e+00> : vector<1xf32>
      %70 = vector.multi_reduction <add>, %69, %cst_50 [1, 2] : vector<1x128x128xf32> to vector<1xf32>
      %71 = vector.shape_cast %70 : vector<1xf32> to vector<1x1x1xf32>
      %72 = vector.extract %71[0, 0, 0] : f32 from vector<1x1x1xf32>
      %c0_51 = arith.constant 0 : index
      %c0_52 = arith.constant 0 : index
      %73 = vector.load %arg12[%c0_51, %c0_52] : memref<128x128xf32, #tpu.memory_space<vmem>>, vector<128x128xf32>
      %74 = vector.shape_cast %73 : vector<128x128xf32> to vector<1x128x128xf32>
      %cst_53 = arith.constant dense<0.000000e+00> : vector<1xf32>
      %75 = vector.multi_reduction <add>, %74, %cst_53 [1, 2] : vector<1x128x128xf32> to vector<1xf32>
      %76 = vector.shape_cast %75 : vector<1xf32> to vector<1x1x1xf32>
      %77 = vector.extract %76[0, 0, 0] : f32 from vector<1x1x1xf32>
      %c0_54 = arith.constant 0 : index
      %c0_55 = arith.constant 0 : index
      %78 = vector.load %arg13[%c0_54, %c0_55] : memref<128x128xf32, #tpu.memory_space<vmem>>, vector<128x128xf32>
      %79 = vector.shape_cast %78 : vector<128x128xf32> to vector<1x128x128xf32>
      %cst_56 = arith.constant dense<0.000000e+00> : vector<1xf32>
      %80 = vector.multi_reduction <add>, %79, %cst_56 [1, 2] : vector<1x128x128xf32> to vector<1xf32>
      %81 = vector.shape_cast %80 : vector<1xf32> to vector<1x1x1xf32>
      %82 = vector.extract %81[0, 0, 0] : f32 from vector<1x1x1xf32>
      %83 = tpu.iota {dimensions = array<i32: 0>} : vector<8x128xi32>
      %84 = tpu.iota {dimensions = array<i32: 1>} : vector<8x128xi32>
      %cst_57 = arith.constant 0.000000e+00 : f32
      %85 = vector.broadcast %cst_57 : f32 to vector<8x128xf32>
      %c0_i32_58 = arith.constant 0 : i32
      %86 = vector.broadcast %c0_i32_58 : i32 to vector<8x128xi32>
      %87 = arith.cmpi eq, %83, %86 : vector<8x128xi32>
      %c0_i32_59 = arith.constant 0 : i32
      %88 = vector.broadcast %c0_i32_59 : i32 to vector<8x128xi32>
      %89 = arith.cmpi eq, %84, %88 : vector<8x128xi32>
      %90 = arith.andi %87, %89 : vector<8x128xi1>
      %91 = vector.broadcast %67 : f32 to vector<8x128xf32>
      %92 = arith.select %90, %91, %85 : vector<8x128xi1>, vector<8x128xf32>
      %c0_i32_60 = arith.constant 0 : i32
      %93 = vector.broadcast %c0_i32_60 : i32 to vector<8x128xi32>
      %94 = arith.cmpi eq, %83, %93 : vector<8x128xi32>
      %c1_i32 = arith.constant 1 : i32
      %95 = vector.broadcast %c1_i32 : i32 to vector<8x128xi32>
      %96 = arith.cmpi eq, %84, %95 : vector<8x128xi32>
      %97 = arith.andi %94, %96 : vector<8x128xi1>
      %98 = vector.broadcast %72 : f32 to vector<8x128xf32>
      %99 = arith.select %97, %98, %92 : vector<8x128xi1>, vector<8x128xf32>
      %c0_i32_61 = arith.constant 0 : i32
      %100 = vector.broadcast %c0_i32_61 : i32 to vector<8x128xi32>
      %101 = arith.cmpi eq, %83, %100 : vector<8x128xi32>
      %c2_i32 = arith.constant 2 : i32
      %102 = vector.broadcast %c2_i32 : i32 to vector<8x128xi32>
      %103 = arith.cmpi eq, %84, %102 : vector<8x128xi32>
      %104 = arith.andi %101, %103 : vector<8x128xi1>
      %105 = vector.broadcast %77 : f32 to vector<8x128xf32>
      %106 = arith.select %104, %105, %99 : vector<8x128xi1>, vector<8x128xf32>
      %c0_i32_62 = arith.constant 0 : i32
      %107 = vector.broadcast %c0_i32_62 : i32 to vector<8x128xi32>
      %108 = arith.cmpi eq, %83, %107 : vector<8x128xi32>
      %c3_i32 = arith.constant 3 : i32
      %109 = vector.broadcast %c3_i32 : i32 to vector<8x128xi32>
      %110 = arith.cmpi eq, %84, %109 : vector<8x128xi32>
      %111 = arith.andi %108, %110 : vector<8x128xi1>
      %112 = vector.broadcast %82 : f32 to vector<8x128xf32>
      %113 = arith.select %111, %112, %106 : vector<8x128xi1>, vector<8x128xf32>
      %c0_63 = arith.constant 0 : index
      %c0_64 = arith.constant 0 : index
      %c0_65 = arith.constant 0 : index
      %114 = vector.load %arg9[%c0_63, %c0_64, %c0_65] : memref<1x8x128xf32, #tpu.memory_space<vmem>>, vector<1x8x128xf32>
      %115 = vector.shape_cast %114 : vector<1x8x128xf32> to vector<8x128xf32>
      %116 = vector.shape_cast %113 : vector<8x128xf32> to vector<1x8x128xf32>
      tpu.vector_store %arg9[%c0_63, %c0_64, %c0_65], %116 {strides = array<i32>} : memref<1x8x128xf32, #tpu.memory_space<vmem>>, vector<1x8x128xf32>,
    } else {
    }
    return
  }
  func.func @transform_0(%arg0: i32, %arg1: i32, %arg2: i32) -> (i32, i32, i32) {
    %c0_i32 = arith.constant 0 : i32
    return %arg0, %arg1, %arg2 : i32, i32, i32
  }
  func.func @transform_1(%arg0: i32, %arg1: i32, %arg2: i32) -> (i32, i32, i32) {
    %c0_i32 = arith.constant 0 : i32
    return %arg0, %arg1, %arg2 : i32, i32, i32
  }
  func.func @transform_2(%arg0: i32, %arg1: i32, %arg2: i32) -> (i32, i32, i32) {
    %c0_i32 = arith.constant 0 : i32
    return %arg0, %arg1, %arg2 : i32, i32, i32
  }
  func.func @transform_3(%arg0: i32, %arg1: i32, %arg2: i32) -> (i32, i32, i32) {
    %c0_i32 = arith.constant 0 : i32
    return %arg0, %arg1, %arg2 : i32, i32, i32
  }
  func.func @transform_4(%arg0: i32, %arg1: i32, %arg2: i32) -> (i32, i32, i32) {
    %c0_i32 = arith.constant 0 : i32
    %c0_i32_0 = arith.constant 0 : i32
    return %arg0, %arg1, %c0_i32 : i32, i32, i32
  }
  func.func @transform_5(%arg0: i32, %arg1: i32, %arg2: i32) -> (i32, i32, i32) {
    %c0_i32 = arith.constant 0 : i32
    %c0_i32_0 = arith.constant 0 : i32
    return %arg0, %c0_i32, %arg2 : i32, i32, i32
  }
  func.func @transform_6(%arg0: i32, %arg1: i32, %arg2: i32) -> (i32, i32, i32) {
    %c0_i32 = arith.constant 0 : i32
    %c0_i32_0 = arith.constant 0 : i32
    %c0_i32_1 = arith.constant 0 : i32
    return %arg0, %c0_i32, %c0_i32_0 : i32, i32, i32
  }
}

</mosaic_0001>

<llo_original>
// kernel: tpu_custom_call.1
$region0: #{tpu_custom_call.1}
  #allocation0 [shape = 'u32[]', space=smem, size = 0x4, offset = 0x4, fixed_abs, tag = 'smem constant byte address 0x4 - core index']
  #allocation1 [shape = 'u32[72,128]{1,0:T(1,128)}', space=vmem, size = 0x9000, scoped, tag = 'internal scratch']
  #allocation2 [shape = 'f32[128,128]{1,0:T(8,128)}', space=vmem, size = 0x10000, scoped, tag = 'scratch operand']
  #allocation3 [shape = 'f32[128,128]{1,0:T(8,128)}', space=vmem, size = 0x10000, scoped, tag = 'scratch operand']
  #allocation4 [shape = 'f32[128,128]{1,0:T(8,128)}', space=vmem, size = 0x10000, scoped, tag = 'scratch operand']
  #allocation5 [shape = 'f32[128,128]{1,0:T(8,128)}', space=vmem, size = 0x10000, scoped, tag = 'scratch operand']
  %s0 = inlined_call_operand.vmem [shape: f32[2,128,128], index: 0, kind: input, shape index: {}]
  %s1 = inlined_call_operand.hbm [shape: f32[2,128,128], index: 1, kind: input, shape index: {}]
  %s2 = inlined_call_operand.hbm [shape: f32[2,128,128], index: 2, kind: input, shape index: {}]
  %s3 = inlined_call_operand.hbm [shape: s8[2,128,128], index: 3, kind: input, shape index: {}]
  %s4 = inlined_call_operand.vmem [shape: f32[2,128,1], index: 4, kind: input, shape index: {}]
  %s5 = inlined_call_operand.vmem [shape: f32[2,1,128], index: 5, kind: input, shape index: {}]
  %s6 = inlined_call_operand.hbm [shape: f32[2,8,128], index: 6, kind: output, shape index: {}]
  %s7 = sld [smem:[#allocation0]]
  $region77: #{tpu_custom_call.1} parent=0
    _
  %s9 = ssub.s32 1, %s7
  %s10 = scalar_select 0, %s9, %s7
  $region1: #{tpu_custom_call.1} parent=0
    #allocation6 [shape = 'u8[131072]{0}', space=vmem, size = 0x20000, scoped, tag = 'input window, operand 1']
    #allocation7 [shape = 's32[2]{0}', space=sflag, size = 0x8, scoped, tag = 'scoped memory for tpu_custom_call.1']
    #allocation8 [shape = 's32[2]{0}', space=sflag, size = 0x8, scoped, tag = 'scoped memory for tpu_custom_call.1']
    #allocation9 [shape = 'u8[131072]{0}', space=vmem, size = 0x20000, scoped, tag = 'input window, operand 2']
    #allocation10 [shape = 's32[2]{0}', space=sflag, size = 0x8, scoped, tag = 'scoped memory for tpu_custom_call.1']
    #allocation11 [shape = 'u8[32768]{0}', space=vmem, size = 0x8000, scoped, tag = 'input window, operand 3']
    #allocation12 [shape = 'u8[8192]{0}', space=vmem, size = 0x2000, scoped, tag = 'output window, operand 0']
    %11 = vsyncpa [#allocation7], 0
    %s12 = scalar_lea.sflag [#allocation7], 1
    %13 = vsyncpa %s12, 0
    %14 = vsyncpa [#allocation10], 0
    %s15 = scalar_lea.sflag [#allocation10], 1
    %16 = vsyncpa %s15, 0
    %17 = vsyncpa [#allocation8], 0
    %s18 = scalar_lea.sflag [#allocation8], 1
    %19 = vsyncpa %s18, 0
    loop: start=0, step=1, limit=4
    $region2: #{tpu_custom_call.1} parent=1 // loop_pre_header
      _
    $region3: #{tpu_custom_call.1} parent=1 // loop_header
      %s21 = sphi 0, %s25
      %p22 = scmp.ge.s32.totalorder %s21, 4
      %s28 = sphi 0, %s47
      %s29 = sphi 0, %s43
      %s30 = sphi 0, %s39
      %s31 = sphi 0, %s28
      %s32 = sphi 0, %s29
      %s33 = sphi 0, %s30
      %s34 = sphi 0, %s31
      %s35 = sphi 0, %s32
      %s36 = sphi 0, %s33
      %s54 = sphi 0, %s56
      %s57 = sphi 0, %s54
      %s58 = sphi 0, %s57
      %s74 = sphi 0, %s58
      %s84 = sphi 0, %s86
      %s87 = sphi 0, %s84
      %s88 = sphi 0, %s87
      %s104 = sphi 0, %s88
      %s114 = sphi 0, %s116
      %s117 = sphi 0, %s114
      %s118 = sphi 0, %s117
      %s134 = sphi 0, %s118
      %s144 = sphi 0, %s146
      %s147 = sphi 0, %s144
      %s148 = sphi 0, %s147
      %s164 = sphi 0, %s148
      %s172 = sphi 0, %s174
      %s175 = sphi 0, %s172
      %s176 = sphi 0, %s175
      %s192 = sphi 0, %s176
      %s200 = sphi 0, %s202
      %s203 = sphi 0, %s200
      %s204 = sphi 0, %s203
      %s220 = sphi 0, %s204
      %s226 = sphi 0, %s228
      %s229 = sphi 0, %s226
      %s230 = sphi 0, %s229
      %s246 = sphi 0, %s230
    $region4: #{tpu_custom_call.1} parent=1 // loop_header_branch
      %24 = sbr.rel (%p22) target = $region8
    $region5: #{tpu_custom_call.1} parent=1 // loop_body
      %s26 = ssub.s32 %s21, 1
      %s27 = ssub.s32 %s21, 2
      %s37 = sadd.s32 1, %s30
      %p38 = scmp.ge.s32.totalorder %s37, 1
      %s39 = scalar_select %p38, 0, %s37
      %s40 = sadd.s32 1, %s29
      %s41 = scalar_select %p38, %s40, %s29
      %p42 = scmp.ge.s32.totalorder %s41, 1
      %s43 = scalar_select %p42, 0, %s41
      %s44 = sadd.s32 1, %s28
      %s45 = scalar_select %p42, %s44, %s28
      %p46 = scmp.ge.s32.totalorder %s45, 2
      %s47 = scalar_select %p46, 0, %s45
      %s48 = ssub.s32 %s28, %s47
      %s49 = ssub.s32 %s29, %s43
      %s50 = sor.u32 %s48, %s49
      %s51 = ssub.s32 %s30, %s39
      %s52 = sor.u32 %s50, %s51
      %p53 = scmp.eq.s32.totalorder %s52, 0
      %s55 = sadd.s32 %s54, 1
      %s56 = scalar_select %p53, %s54, %s55
      %p59 = pneg %p53
      %p60 = scmp.eq.s32.totalorder %s21, 1
      %p61 = por %p59, %p60
      %p62 = scmp.ne.s32.totalorder %s54, %s57
      %p63 = scmp.eq.s32.totalorder %s21, 0
      %p64 = por %p62, %p63
      %p65 = scmp.ne.s32.totalorder %s54, %s57
      %p66 = scmp.eq.s32.totalorder %s26, 1
      %p67 = por %p65, %p66
      %p68 = scmp.ne.s32.totalorder %s57, %s58
      %p69 = scmp.eq.s32.totalorder %s26, 0
      %p70 = por %p68, %p69
      %p71 = scmp.ne.s32.totalorder %s57, %s58
      %p72 = scmp.eq.s32.totalorder %s27, 1
      %p73 = por %p71, %p72
      %p75 = scmp.ne.s32.totalorder %s58, %s74
      %p76 = scmp.eq.s32.totalorder %s27, 0
      %p77 = por %p75, %p76
      %s78 = ssub.s32 %s28, %s47
      %s79 = ssub.s32 %s29, %s43
      %s80 = sor.u32 %s78, %s79
      %s81 = ssub.s32 %s30, %s39
      %s82 = sor.u32 %s80, %s81
      %p83 = scmp.eq.s32.totalorder %s82, 0
      %s85 = sadd.s32 %s84, 1
      %s86 = scalar_select %p83, %s84, %s85
      %p89 = pneg %p83
      %p90 = scmp.eq.s32.totalorder %s21, 1
      %p91 = por %p89, %p90
      %p92 = scmp.ne.s32.totalorder %s84, %s87
      %p93 = scmp.eq.s32.totalorder %s21, 0
      %p94 = por %p92, %p93
      %p95 = scmp.ne.s32.totalorder %s84, %s87
      %p96 = scmp.eq.s32.totalorder %s26, 1
      %p97 = por %p95, %p96
      %p98 = scmp.ne.s32.totalorder %s87, %s88
      %p99 = scmp.eq.s32.totalorder %s26, 0
      %p100 = por %p98, %p99
      %p101 = scmp.ne.s32.totalorder %s87, %s88
      %p102 = scmp.eq.s32.totalorder %s27, 1
      %p103 = por %p101, %p102
      %p105 = scmp.ne.s32.totalorder %s88, %s104
      %p106 = scmp.eq.s32.totalorder %s27, 0
      %p107 = por %p105, %p106
      %s108 = ssub.s32 %s28, %s47
      %s109 = ssub.s32 %s29, %s43
      %s110 = sor.u32 %s108, %s109
      %s111 = ssub.s32 %s30, %s39
      %s112 = sor.u32 %s110, %s111
      %p113 = scmp.eq.s32.totalorder %s112, 0
      %s115 = sadd.s32 %s114, 1
      %s116 = scalar_select %p113, %s114, %s115
      %p119 = pneg %p113
      %p120 = scmp.eq.s32.totalorder %s21, 1
      %p121 = por %p119, %p120
      %p122 = scmp.ne.s32.totalorder %s114, %s117
      %p123 = scmp.eq.s32.totalorder %s21, 0
      %p124 = por %p122, %p123
      %p125 = scmp.ne.s32.totalorder %s114, %s117
      %p126 = scmp.eq.s32.totalorder %s26, 1
      %p127 = por %p125, %p126
      %p128 = scmp.ne.s32.totalorder %s117, %s118
      %p129 = scmp.eq.s32.totalorder %s26, 0
      %p130 = por %p128, %p129
      %p131 = scmp.ne.s32.totalorder %s117, %s118
      %p132 = scmp.eq.s32.totalorder %s27, 1
      %p133 = por %p131, %p132
      %p135 = scmp.ne.s32.totalorder %s118, %s134
      %p136 = scmp.eq.s32.totalorder %s27, 0
      %p137 = por %p135, %p136
      %s138 = ssub.s32 %s28, %s47
      %s139 = ssub.s32 %s29, %s43
      %s140 = sor.u32 %s138, %s139
      %s141 = ssub.s32 %s30, %s39
      %s142 = sor.u32 %s140, %s141
      %p143 = scmp.eq.s32.totalorder %s142, 0
      %s145 = sadd.s32 %s144, 1
      %s146 = scalar_select %p143, %s144, %s145
      %p149 = pneg %p143
      %p150 = scmp.eq.s32.totalorder %s21, 1
      %p151 = por %p149, %p150
      %p152 = scmp.ne.s32.totalorder %s144, %s147
      %p153 = scmp.eq.s32.totalorder %s21, 0
      %p154 = por %p152, %p153
      %p155 = scmp.ne.s32.totalorder %s144, %s147
      %p156 = scmp.eq.s32.totalorder %s26, 1
      %p157 = por %p155, %p156
      %p158 = scmp.ne.s32.totalorder %s147, %s148
      %p159 = scmp.eq.s32.totalorder %s26, 0
      %p160 = por %p158, %p159
      %p161 = scmp.ne.s32.totalorder %s147, %s148
      %p162 = scmp.eq.s32.totalorder %s27, 1
      %p163 = por %p161, %p162
      %p165 = scmp.ne.s32.totalorder %s148, %s164
      %p166 = scmp.eq.s32.totalorder %s27, 0
      %p167 = por %p165, %p166
      %s168 = ssub.s32 %s28, %s47
      %s169 = ssub.s32 %s29, %s43
      %s170 = sor.u32 %s168, %s169
      %p171 = scmp.eq.s32.totalorder %s170, 0
      %s173 = sadd.s32 %s172, 1
      %s174 = scalar_select %p171, %s172, %s173
      %p177 = pneg %p171
      %p178 = scmp.eq.s32.totalorder %s21, 1
      %p179 = por %p177, %p178
      %p180 = scmp.ne.s32.totalorder %s172, %s175
      %p181 = scmp.eq.s32.totalorder %s21, 0
      %p182 = por %p180, %p181
      %p183 = scmp.ne.s32.totalorder %s172, %s175
      %p184 = scmp.eq.s32.totalorder %s26, 1
      %p185 = por %p183, %p184
      %p186 = scmp.ne.s32.totalorder %s175, %s176
      %p187 = scmp.eq.s32.totalorder %s26, 0
      %p188 = por %p186, %p187
      %p189 = scmp.ne.s32.totalorder %s175, %s176
      %p190 = scmp.eq.s32.totalorder %s27, 1
      %p191 = por %p189, %p190
      %p193 = scmp.ne.s32.totalorder %s176, %s192
      %p194 = scmp.eq.s32.totalorder %s27, 0
      %p195 = por %p193, %p194
      %s196 = ssub.s32 %s28, %s47
      %s197 = ssub.s32 %s30, %s39
      %s198 = sor.u32 %s196, %s197
      %p199 = scmp.eq.s32.totalorder %s198, 0
      %s201 = sadd.s32 %s200, 1
      %s202 = scalar_select %p199, %s200, %s201
      %p205 = pneg %p199
      %p206 = scmp.eq.s32.totalorder %s21, 1
      %p207 = por %p205, %p206
      %p208 = scmp.ne.s32.totalorder %s200, %s203
      %p209 = scmp.eq.s32.totalorder %s21, 0
      %p210 = por %p208, %p209
      %p211 = scmp.ne.s32.totalorder %s200, %s203
      %p212 = scmp.eq.s32.totalorder %s26, 1
      %p213 = por %p211, %p212
      %p214 = scmp.ne.s32.totalorder %s203, %s204
      %p215 = scmp.eq.s32.totalorder %s26, 0
      %p216 = por %p214, %p215
      %p217 = scmp.ne.s32.totalorder %s203, %s204
      %p218 = scmp.eq.s32.totalorder %s27, 1
      %p219 = por %p217, %p218
      %p221 = scmp.ne.s32.totalorder %s204, %s220
      %p222 = scmp.eq.s32.totalorder %s27, 0
      %p223 = por %p221, %p222
      %s224 = ssub.s32 %s28, %s47
      %p225 = scmp.eq.s32.totalorder %s224, 0
      %s227 = sadd.s32 %s226, 1
      %s228 = scalar_select %p225, %s226, %s227
      %p231 = pneg %p225
      %p232 = scmp.eq.s32.totalorder %s21, 1
      %p233 = por %p231, %p232
      %p234 = scmp.ne.s32.totalorder %s226, %s229
      %p235 = scmp.eq.s32.totalorder %s21, 0
      %p236 = por %p234, %p235
      %p237 = scmp.ne.s32.totalorder %s226, %s229
      %p238 = scmp.eq.s32.totalorder %s26, 1
      %p239 = por %p237, %p238
      %p240 = scmp.ne.s32.totalorder %s229, %s230
      %p241 = scmp.eq.s32.totalorder %s26, 0
      %p242 = por %p240, %p241
      %p243 = scmp.ne.s32.totalorder %s229, %s230
      %p244 = scmp.eq.s32.totalorder %s27, 1
      %p245 = por %p243, %p244
      %p247 = scmp.ne.s32.totalorder %s230, %s246
      %p248 = scmp.eq.s32.totalorder %s27, 0
      %p249 = por %p247, %p248
      %p250 = scmp.le.s32.totalorder 1, %s21
      %p251 = scmp.lt.s32.totalorder %s21, 3
      %p252 = pnand %p250, %p251
      %p253 = pneg %p252
      // Predicated region
      $region9: #{tpu_custom_call.1} parent=5 // pred_check
        _
      $region10: #{tpu_custom_call.1} parent=5 // pred_check_branch
        %255 = sbr.rel (%p252) target = $region12
      $region11: #{tpu_custom_call.1} parent=5 // pred_region
        %s256 = ssub.s32 %s21, 1
      $region12: #{tpu_custom_call.1} parent=5 // pred_fallthru
        _
      %p257 = scmp.lt.s32.totalorder %s21, 2
      // Predicated region
      $region13: #{tpu_custom_call.1} parent=5 // pred_check
        %p258 = pneg %p257
      $region14: #{tpu_custom_call.1} parent=5 // pred_check_branch
        %260 = sbr.rel (%p258) target = $region16
      $region15: #{tpu_custom_call.1} parent=5 // pred_region
        // Predicated region
        $region17: #{tpu_custom_call.1} parent=15 // pred_check
          %p261 = pneg %p64
        $region18: #{tpu_custom_call.1} parent=15 // pred_check_branch
          %263 = sbr.rel (%p261) target = $region20
        $region19: #{tpu_custom_call.1} parent=15 // pred_region
          %s264 = smul.u32 16, %s29
          %p265 = scmp.lt.s32.totalorder %s28, 1
          %s266 = scalar_select %p265, %s28, 1
          %p267 = scmp.lt.s32.totalorder %s264, 15
          %s268 = scalar_select %p267, %s264, 15
          %p269 = scmp.lt.s32.totalorder %s30, 0
          %s270 = scalar_select %p269, %s30, 0
          %s271 = sadd.s32 %s270, %s268
          %s272 = smul.addr %s266, 16
          %s273 = sadd.s32 %s271, %s272
          %s274 = smul.addr %s273, 8
          %s275 = scalar_lea.vmem %s0, %s274
          %s276 = smul.u32 16, %s29
        $region20: #{tpu_custom_call.1} parent=15 // pred_fallthru
          _
        // Predicated region
        $region21: #{tpu_custom_call.1} parent=15 // pred_check
          %p277 = pneg %p94
        $region22: #{tpu_custom_call.1} parent=15 // pred_check_branch
          %279 = sbr.rel (%p277) target = $region24
        $region23: #{tpu_custom_call.1} parent=15 // pred_region
          %s280 = sand.u32 %s84, 1
          %s281 = scalar_lea.sflag [#allocation7], %s280
          %s282 = sand.u32 %s84, 1
          %s283 = smul.addr %s282, 128
          %s284 = scalar_lea.vmem [#allocation6], %s283
          %s285 = smul.u32 16, %s29
          %287 = vsyncadd %s281, 0
          %s288 = sadd.s32 %s30, %s285
          %s289 = smul.addr %s28, 16
          %s290 = sadd.s32 %s288, %s289
          %s291 = smul.addr %s290, 8
          %s292 = scalar_lea.hbm %s1, %s291
          %s293 = sshll.u32 %s292, 4
          %s294 = int_to_ptr.hbm [resolvable:$true] %s293
          %s295 = sshll.u32 %s284, 4
          %s296 = int_to_ptr.vmem [resolvable:$true] %s295
          %301 = dma.hbm_to_vmem [thread:$0]  %s294, 2048, %s296, %s281, 128, 128, 8
        $region24: #{tpu_custom_call.1} parent=15 // pred_fallthru
          _
        // Predicated region
        $region25: #{tpu_custom_call.1} parent=15 // pred_check
          %p302 = pneg %p124
        $region26: #{tpu_custom_call.1} parent=15 // pred_check_branch
          %304 = sbr.rel (%p302) target = $region28
        $region27: #{tpu_custom_call.1} parent=15 // pred_region
          %s305 = sand.u32 %s21, 1
          %s306 = scalar_lea.sflag [#allocation10], %s305
          %s307 = sand.u32 %s114, 1
          %s308 = smul.addr %s307, 128
          %s309 = scalar_lea.vmem [#allocation9], %s308
          %s310 = smul.u32 16, %s29
          %312 = vsyncadd %s306, 0
          %s313 = sadd.s32 %s30, %s310
          %s314 = smul.addr %s28, 16
          %s315 = sadd.s32 %s313, %s314
          %s316 = smul.addr %s315, 8
          %s317 = scalar_lea.hbm %s2, %s316
          %s318 = sshll.u32 %s317, 4
          %s319 = int_to_ptr.hbm [resolvable:$true] %s318
          %s320 = sshll.u32 %s309, 4
          %s321 = int_to_ptr.vmem [resolvable:$true] %s320
          %326 = dma.hbm_to_vmem [thread:$0]  %s319, 2048, %s321, %s306, 128, 128, 8
        $region28: #{tpu_custom_call.1} parent=15 // pred_fallthru
          _
        // Predicated region
        $region29: #{tpu_custom_call.1} parent=15 // pred_check
          %p327 = pneg %p154
        $region30: #{tpu_custom_call.1} parent=15 // pred_check_branch
          %329 = sbr.rel (%p327) target = $region32
        $region31: #{tpu_custom_call.1} parent=15 // pred_region
          %s330 = sand.u32 %s21, 1
          %s331 = scalar_lea.sflag [#allocation10], %s330
          %s332 = sand.u32 %s144, 1
          %s333 = smul.addr %s332, 32
          %s334 = scalar_lea.vmem [#allocation11], %s333
          %s335 = smul.u32 4, %s29
          %337 = vsyncadd %s331, 0
          %s338 = sadd.s32 %s30, %s335
          %s339 = smul.addr %s28, 4
          %s340 = sadd.s32 %s338, %s339
          %s341 = smul.addr %s340, 8
          %s342 = scalar_lea.hbm %s3, %s341
          %s343 = sshll.u32 %s342, 4
          %s344 = int_to_ptr.hbm [resolvable:$true] %s343
          %s345 = sshll.u32 %s334, 4
          %s346 = int_to_ptr.vmem [resolvable:$true] %s345
          %351 = dma.hbm_to_vmem [thread:$0]  %s344, 512, %s346, %s331, 128, 128, 8
        $region32: #{tpu_custom_call.1} parent=15 // pred_fallthru
          _
        // Predicated region
        $region33: #{tpu_custom_call.1} parent=15 // pred_check
          %p352 = pneg %p182
        $region34: #{tpu_custom_call.1} parent=15 // pred_check_branch
          %354 = sbr.rel (%p352) target = $region36
        $region35: #{tpu_custom_call.1} parent=15 // pred_region
          %s355 = smul.u32 16, %s29
          %p356 = scmp.lt.s32.totalorder %s28, 1
          %s357 = scalar_select %p356, %s28, 1
          %p358 = scmp.lt.s32.totalorder %s355, 15
          %s359 = scalar_select %p358, %s355, 15
          %s360 = smul.addr %s357, 16
          %s361 = sadd.s32 %s359, %s360
          %s362 = smul.addr %s361, 8
          %s363 = scalar_lea.vmem %s4, %s362
          %s364 = smul.u32 16, %s29
        $region36: #{tpu_custom_call.1} parent=15 // pred_fallthru
          _
        // Predicated region
        $region37: #{tpu_custom_call.1} parent=15 // pred_check
          %p365 = pneg %p210
        $region38: #{tpu_custom_call.1} parent=15 // pred_check_branch
          %367 = sbr.rel (%p365) target = $region40
        $region39: #{tpu_custom_call.1} parent=15 // pred_region
          %p368 = scmp.lt.s32.totalorder %s28, 1
          %s369 = scalar_select %p368, %s28, 1
          %p370 = scmp.lt.s32.totalorder %s30, 0
          %s371 = scalar_select %p370, %s30, 0
          %s372 = sadd.s32 %s371, %s369
          %s373 = scalar_lea.vmem %s5, %s372
        $region40: #{tpu_custom_call.1} parent=15 // pred_fallthru
          _
      $region16: #{tpu_custom_call.1} parent=5 // pred_fallthru
        _
      %p374 = scmp.le.s32.totalorder 1, %s21
      %p375 = scmp.lt.s32.totalorder %s21, 3
      %p376 = pnand %p374, %p375
      %p377 = pneg %p376
      // Predicated region
      $region41: #{tpu_custom_call.1} parent=5 // pred_check
        _
      $region42: #{tpu_custom_call.1} parent=5 // pred_check_branch
        %379 = sbr.rel (%p376) target = $region44
      $region43: #{tpu_custom_call.1} parent=5 // pred_region
        %s380 = ssub.s32 %s21, 1
        %s381 = sand.u32 %s87, 1
        %s382 = scalar_lea.sflag [#allocation7], %s381
        %s383 = sand.u32 %s87, 1
        %s384 = smul.addr %s383, 128
        %s385 = scalar_lea.vmem [#allocation6], %s384
        // Predicated region
        $region45: #{tpu_custom_call.1} parent=43 // pred_check
          %p386 = pneg %p100
        $region46: #{tpu_custom_call.1} parent=43 // pred_check_branch
          %388 = sbr.rel (%p386) target = $region48
        $region47: #{tpu_custom_call.1} parent=43 // pred_region
          %390 = dma.done %s382, 2048
        $region48: #{tpu_custom_call.1} parent=43 // pred_fallthru
          _
        %s391 = sand.u32 %s26, 1
        %s392 = scalar_lea.sflag [#allocation10], %s391
        %s393 = sand.u32 %s117, 1
        %s394 = smul.addr %s393, 128
        %s395 = scalar_lea.vmem [#allocation9], %s394
        // Predicated region
        $region49: #{tpu_custom_call.1} parent=43 // pred_check
          %p396 = pneg %p130
        $region50: #{tpu_custom_call.1} parent=43 // pred_check_branch
          %398 = sbr.rel (%p396) target = $region52
        $region51: #{tpu_custom_call.1} parent=43 // pred_region
          %400 = dma.done %s392, 2048
        $region52: #{tpu_custom_call.1} parent=43 // pred_fallthru
          _
        %s401 = sand.u32 %s26, 1
        %s402 = scalar_lea.sflag [#allocation10], %s401
        %s403 = sand.u32 %s147, 1
        %s404 = smul.addr %s403, 32
        %s405 = scalar_lea.vmem [#allocation11], %s404
        // Predicated region
        $region53: #{tpu_custom_call.1} parent=43 // pred_check
          %p406 = pneg %p160
        $region54: #{tpu_custom_call.1} parent=43 // pred_check_branch
          %408 = sbr.rel (%p406) target = $region56
        $region55: #{tpu_custom_call.1} parent=43 // pred_region
          %410 = dma.done %s402, 512
        $region56: #{tpu_custom_call.1} parent=43 // pred_fallthru
          _
        %s411 = smul.u32 16, %s32
        %p412 = scmp.lt.s32.totalorder %s31, 1
        %s413 = scalar_select %p412, %s31, 1
        %p414 = scmp.lt.s32.totalorder %s411, 15
        %s415 = scalar_select %p414, %s411, 15
        %p416 = scmp.lt.s32.totalorder %s33, 0
        %s417 = scalar_select %p416, %s33, 0
        %s418 = sadd.s32 %s417, %s415
        %s419 = smul.addr %s413, 16
        %s420 = sadd.s32 %s418, %s419
        %s421 = smul.addr %s420, 8
        %s422 = scalar_lea.vmem %s0, %s421
        %p423 = pneg %p70
        %p424 = pneg %p67
        %s425 = sand.u32 %s87, 1
        %s426 = scalar_lea.sflag [#allocation7], %s425
        %s427 = sand.u32 %s87, 1
        %s428 = smul.addr %s427, 128
        %s429 = scalar_lea.vmem [#allocation6], %s428
        %p430 = pneg %p100
        %p431 = pneg %p97
        %s432 = sand.u32 %s26, 1
        %s433 = scalar_lea.sflag [#allocation10], %s432
        %s434 = sand.u32 %s117, 1
        %s435 = smul.addr %s434, 128
        %s436 = scalar_lea.vmem [#allocation9], %s435
        %p437 = pneg %p130
        %p438 = pneg %p127
        %s439 = sand.u32 %s26, 1
        %s440 = scalar_lea.sflag [#allocation10], %s439
        %s441 = sand.u32 %s147, 1
        %s442 = smul.addr %s441, 32
        %s443 = scalar_lea.vmem [#allocation11], %s442
        %p444 = pneg %p160
        %p445 = pneg %p157
        %s446 = smul.u32 16, %s32
        %p447 = scmp.lt.s32.totalorder %s31, 1
        %s448 = scalar_select %p447, %s31, 1
        %p449 = scmp.lt.s32.totalorder %s446, 15
        %s450 = scalar_select %p449, %s446, 15
        %s451 = smul.addr %s448, 16
        %s452 = sadd.s32 %s450, %s451
        %s453 = smul.addr %s452, 8
        %s454 = scalar_lea.vmem %s4, %s453
        %p455 = pneg %p188
        %p456 = pneg %p185
        %p457 = scmp.lt.s32.totalorder %s31, 1
        %s458 = scalar_select %p457, %s31, 1
        %p459 = scmp.lt.s32.totalorder %s33, 0
        %s460 = scalar_select %p459, %s33, 0
        %s461 = sadd.s32 %s460, %s458
        %s462 = scalar_lea.vmem %s5, %s461
        %p463 = pneg %p216
        %p464 = pneg %p213
        %p465 = pneg %p242
        %p466 = pneg %p239
        %s467 = sand.u32 %s229, 1
        %s468 = scalar_lea.sflag [#allocation8], %s467
        %s469 = sand.u32 %s229, 1
        %s470 = smul.addr %s469, 8
        %s471 = scalar_lea.vmem [#allocation12], %s470
        %s472 = smul.u32 16, %s32
        %p473 = scmp.lt.s32.totalorder %s31, 1
        %s474 = scalar_select %p473, %s31, 1
        %p475 = scmp.lt.s32.totalorder %s472, 15
        %s476 = scalar_select %p475, %s472, 15
        %p477 = scmp.lt.s32.totalorder %s33, 0
        %s478 = scalar_select %p477, %s33, 0
        %s479 = sadd.s32 %s478, %s476
        %s480 = smul.addr %s474, 16
        %s481 = sadd.s32 %s479, %s480
        %s482 = smul.addr %s481, 8
        %s483 = scalar_lea.vmem %s0, %s482
        %s484 = smul.u32 16, %s32
        %s485 = smul.u32 16, %s32
        %s486 = smul.u32 16, %s32
        %s487 = smul.u32 4, %s32
        %s488 = smul.u32 16, %s32
        %p489 = scmp.lt.s32.totalorder %s31, 1
        %s490 = scalar_select %p489, %s31, 1
        %p491 = scmp.lt.s32.totalorder %s488, 15
        %s492 = scalar_select %p491, %s488, 15
        %s493 = smul.addr %s490, 16
        %s494 = sadd.s32 %s492, %s493
        %s495 = smul.addr %s494, 8
        %s496 = scalar_lea.vmem %s4, %s495
        %s497 = smul.u32 16, %s32
        %p498 = scmp.lt.s32.totalorder %s31, 1
        %s499 = scalar_select %p498, %s31, 1
        %p500 = scmp.lt.s32.totalorder %s33, 0
        %s501 = scalar_select %p500, %s33, 0
        %s502 = sadd.s32 %s501, %s499
        %s503 = scalar_lea.vmem %s5, %s502
        %p504 = scmp.eq.s32.totalorder %s32, 0
        %p505 = scmp.eq.s32.totalorder %s33, 0
        %p506 = pnand %p504, %p505
        %p507 = pneg %p506
        // Predicated region
        $region57: #{tpu_custom_call.1} parent=43 // pred_check
          _
        $region58: #{tpu_custom_call.1} parent=43 // pred_check_branch
          %509 = sbr.rel (%p506) target = $region60
        $region59: #{tpu_custom_call.1} parent=43 // pred_region
          %510 = vst [vmem:[#allocation2] sm:$0xff] 0.0
          %511 = vst [vmem:[#allocation2 + $0x8] sm:$0xff] 0.0
          %512 = vst [vmem:[#allocation2 + $0x10] sm:$0xff] 0.0
          %513 = vst [vmem:[#allocation2 + $0x18] sm:$0xff] 0.0
          %514 = vst [vmem:[#allocation2 + $0x20] sm:$0xff] 0.0
          %515 = vst [vmem:[#allocation2 + $0x28] sm:$0xff] 0.0
          %516 = vst [vmem:[#allocation2 + $0x30] sm:$0xff] 0.0
          %517 = vst [vmem:[#allocation2 + $0x38] sm:$0xff] 0.0
          %518 = vst [vmem:[#allocation2 + $0x40] sm:$0xff] 0.0
          %519 = vst [vmem:[#allocation2 + $0x48] sm:$0xff] 0.0
          %520 = vst [vmem:[#allocation2 + $0x50] sm:$0xff] 0.0
          %521 = vst [vmem:[#allocation2 + $0x58] sm:$0xff] 0.0
          %522 = vst [vmem:[#allocation2 + $0x60] sm:$0xff] 0.0
          %523 = vst [vmem:[#allocation2 + $0x68] sm:$0xff] 0.0
          %524 = vst [vmem:[#allocation2 + $0x70] sm:$0xff] 0.0
          %525 = vst [vmem:[#allocation2 + $0x78] sm:$0xff] 0.0
          %526 = vst [vmem:[#allocation3] sm:$0xff] 0.0
          %527 = vst [vmem:[#allocation3 + $0x8] sm:$0xff] 0.0
          %528 = vst [vmem:[#allocation3 + $0x10] sm:$0xff] 0.0
          %529 = vst [vmem:[#allocation3 + $0x18] sm:$0xff] 0.0
          %530 = vst [vmem:[#allocation3 + $0x20] sm:$0xff] 0.0
          %531 = vst [vmem:[#allocation3 + $0x28] sm:$0xff] 0.0
          %532 = vst [vmem:[#allocation3 + $0x30] sm:$0xff] 0.0
          %533 = vst [vmem:[#allocation3 + $0x38] sm:$0xff] 0.0
          %534 = vst [vmem:[#allocation3 + $0x40] sm:$0xff] 0.0
          %535 = vst [vmem:[#allocation3 + $0x48] sm:$0xff] 0.0
          %536 = vst [vmem:[#allocation3 + $0x50] sm:$0xff] 0.0
          %537 = vst [vmem:[#allocation3 + $0x58] sm:$0xff] 0.0
          %538 = vst [vmem:[#allocation3 + $0x60] sm:$0xff] 0.0
          %539 = vst [vmem:[#allocation3 + $0x68] sm:$0xff] 0.0
          %540 = vst [vmem:[#allocation3 + $0x70] sm:$0xff] 0.0
          %541 = vst [vmem:[#allocation3 + $0x78] sm:$0xff] 0.0
          %542 = vst [vmem:[#allocation4] sm:$0xff] 0.0
          %543 = vst [vmem:[#allocation4 + $0x8] sm:$0xff] 0.0
          %544 = vst [vmem:[#allocation4 + $0x10] sm:$0xff] 0.0
          %545 = vst [vmem:[#allocation4 + $0x18] sm:$0xff] 0.0
          %546 = vst [vmem:[#allocation4 + $0x20] sm:$0xff] 0.0
          %547 = vst [vmem:[#allocation4 + $0x28] sm:$0xff] 0.0
          %548 = vst [vmem:[#allocation4 + $0x30] sm:$0xff] 0.0
          %549 = vst [vmem:[#allocation4 + $0x38] sm:$0xff] 0.0
          %550 = vst [vmem:[#allocation4 + $0x40] sm:$0xff] 0.0
          %551 = vst [vmem:[#allocation4 + $0x48] sm:$0xff] 0.0
          %552 = vst [vmem:[#allocation4 + $0x50] sm:$0xff] 0.0
          %553 = vst [vmem:[#allocation4 + $0x58] sm:$0xff] 0.0
          %554 = vst [vmem:[#allocation4 + $0x60] sm:$0xff] 0.0
          %555 = vst [vmem:[#allocation4 + $0x68] sm:$0xff] 0.0
          %556 = vst [vmem:[#allocation4 + $0x70] sm:$0xff] 0.0
          %557 = vst [vmem:[#allocation4 + $0x78] sm:$0xff] 0.0
          %558 = vst [vmem:[#allocation5] sm:$0xff] 0.0
          %559 = vst [vmem:[#allocation5 + $0x8] sm:$0xff] 0.0
          %560 = vst [vmem:[#allocation5 + $0x10] sm:$0xff] 0.0
          %561 = vst [vmem:[#allocation5 + $0x18] sm:$0xff] 0.0
          %562 = vst [vmem:[#allocation5 + $0x20] sm:$0xff] 0.0
          %563 = vst [vmem:[#allocation5 + $0x28] sm:$0xff] 0.0
          %564 = vst [vmem:[#allocation5 + $0x30] sm:$0xff] 0.0
          %565 = vst [vmem:[#allocation5 + $0x38] sm:$0xff] 0.0
          %566 = vst [vmem:[#allocation5 + $0x40] sm:$0xff] 0.0
          %567 = vst [vmem:[#allocation5 + $0x48] sm:$0xff] 0.0
          %568 = vst [vmem:[#allocation5 + $0x50] sm:$0xff] 0.0
          %569 = vst [vmem:[#allocation5 + $0x58] sm:$0xff] 0.0
          %570 = vst [vmem:[#allocation5 + $0x60] sm:$0xff] 0.0
          %571 = vst [vmem:[#allocation5 + $0x68] sm:$0xff] 0.0
          %572 = vst [vmem:[#allocation5 + $0x70] sm:$0xff] 0.0
          %573 = vst [vmem:[#allocation5 + $0x78] sm:$0xff] 0.0
        $region60: #{tpu_custom_call.1} parent=43 // pred_fallthru
          _
        %v574 = vld [vmem:[%s483] sm:$0xff]
        %v575 = vld [vmem:[%s483 + $0x8] sm:$0xff]
        %v576 = vld [vmem:[%s483 + $0x10] sm:$0xff]
        %v577 = vld [vmem:[%s483 + $0x18] sm:$0xff]
        %v578 = vld [vmem:[%s483 + $0x20] sm:$0xff]
        %v579 = vld [vmem:[%s483 + $0x28] sm:$0xff]
        %v580 = vld [vmem:[%s483 + $0x30] sm:$0xff]
        %v581 = vld [vmem:[%s483 + $0x38] sm:$0xff]
        %v582 = vld [vmem:[%s483 + $0x40] sm:$0xff]
        %v583 = vld [vmem:[%s483 + $0x48] sm:$0xff]
        %v584 = vld [vmem:[%s483 + $0x50] sm:$0xff]
        %v585 = vld [vmem:[%s483 + $0x58] sm:$0xff]
        %v586 = vld [vmem:[%s483 + $0x60] sm:$0xff]
        %v587 = vld [vmem:[%s483 + $0x68] sm:$0xff]
        %v588 = vld [vmem:[%s483 + $0x70] sm:$0xff]
        %v589 = vld [vmem:[%s483 + $0x78] sm:$0xff]
        %v590 = vmax.f32 %v574, 1e-06
        %v591 = vmax.f32 %v575, 1e-06
        %v592 = vmax.f32 %v576, 1e-06
        %v593 = vmax.f32 %v577, 1e-06
        %v594 = vmax.f32 %v578, 1e-06
        %v595 = vmax.f32 %v579, 1e-06
        %v596 = vmax.f32 %v580, 1e-06
        %v597 = vmax.f32 %v581, 1e-06
        %v598 = vmax.f32 %v582, 1e-06
        %v599 = vmax.f32 %v583, 1e-06
        %v600 = vmax.f32 %v584, 1e-06
        %v601 = vmax.f32 %v585, 1e-06
        %v602 = vmax.f32 %v586, 1e-06
        %v603 = vmax.f32 %v587, 1e-06
        %v604 = vmax.f32 %v588, 1e-06
        %v605 = vmax.f32 %v589, 1e-06
        %v606 = vmin.f32 %v590, 0.999999
        %v607 = vmin.f32 %v591, 0.999999
        %v608 = vmin.f32 %v592, 0.999999
        %v609 = vmin.f32 %v593, 0.999999
        %v610 = vmin.f32 %v594, 0.999999
        %v611 = vmin.f32 %v595, 0.999999
        %v612 = vmin.f32 %v596, 0.999999
        %v613 = vmin.f32 %v597, 0.999999
        %v614 = vmin.f32 %v598, 0.999999
        %v615 = vmin.f32 %v599, 0.999999
        %v616 = vmin.f32 %v600, 0.999999
        %v617 = vmin.f32 %v601, 0.999999
        %v618 = vmin.f32 %v602, 0.999999
        %v619 = vmin.f32 %v603, 0.999999
        %v620 = vmin.f32 %v604, 0.999999
        %v621 = vmin.f32 %v605, 0.999999
        %v622 = vld [vmem:[%s385] sm:$0xff]
        %v623 = vld [vmem:[%s385 + $0x8] sm:$0xff]
        %v624 = vld [vmem:[%s385 + $0x10] sm:$0xff]
        %v625 = vld [vmem:[%s385 + $0x18] sm:$0xff]
        %v626 = vld [vmem:[%s385 + $0x20] sm:$0xff]
        %v627 = vld [vmem:[%s385 + $0x28] sm:$0xff]
        %v628 = vld [vmem:[%s385 + $0x30] sm:$0xff]
        %v629 = vld [vmem:[%s385 + $0x38] sm:$0xff]
        %v630 = vld [vmem:[%s385 + $0x40] sm:$0xff]
        %v631 = vld [vmem:[%s385 + $0x48] sm:$0xff]
        %v632 = vld [vmem:[%s385 + $0x50] sm:$0xff]
        %v633 = vld [vmem:[%s385 + $0x58] sm:$0xff]
        %v634 = vld [vmem:[%s385 + $0x60] sm:$0xff]
        %v635 = vld [vmem:[%s385 + $0x68] sm:$0xff]
        %v636 = vld [vmem:[%s385 + $0x70] sm:$0xff]
        %v637 = vld [vmem:[%s385 + $0x78] sm:$0xff]
        %v638 = vld [vmem:[%s395] sm:$0xff]
        %v639 = vld [vmem:[%s395 + $0x8] sm:$0xff]
        %v640 = vld [vmem:[%s395 + $0x10] sm:$0xff]
        %v641 = vld [vmem:[%s395 + $0x18] sm:$0xff]
        %v642 = vld [vmem:[%s395 + $0x20] sm:$0xff]
        %v643 = vld [vmem:[%s395 + $0x28] sm:$0xff]
        %v644 = vld [vmem:[%s395 + $0x30] sm:$0xff]
        %v645 = vld [vmem:[%s395 + $0x38] sm:$0xff]
        %v646 = vld [vmem:[%s395 + $0x40] sm:$0xff]
        %v647 = vld [vmem:[%s395 + $0x48] sm:$0xff]
        %v648 = vld [vmem:[%s395 + $0x50] sm:$0xff]
        %v649 = vld [vmem:[%s395 + $0x58] sm:$0xff]
        %v650 = vld [vmem:[%s395 + $0x60] sm:$0xff]
        %v651 = vld [vmem:[%s395 + $0x68] sm:$0xff]
        %v652 = vld [vmem:[%s395 + $0x70] sm:$0xff]
        %v653 = vld [vmem:[%s395 + $0x78] sm:$0xff]
        %vm654 = vcmp.gt.f32.partialorder %v638, 0.5
        %vm655 = vcmp.gt.f32.partialorder %v639, 0.5
        %vm656 = vcmp.gt.f32.partialorder %v640, 0.5
        %vm657 = vcmp.gt.f32.partialorder %v641, 0.5
        %vm658 = vcmp.gt.f32.partialorder %v642, 0.5
        %vm659 = vcmp.gt.f32.partialorder %v643, 0.5
        %vm660 = vcmp.gt.f32.partialorder %v644, 0.5
        %vm661 = vcmp.gt.f32.partialorder %v645, 0.5
        %vm662 = vcmp.gt.f32.partialorder %v646, 0.5
        %vm663 = vcmp.gt.f32.partialorder %v647, 0.5
        %vm664 = vcmp.gt.f32.partialorder %v648, 0.5
        %vm665 = vcmp.gt.f32.partialorder %v649, 0.5
        %vm666 = vcmp.gt.f32.partialorder %v650, 0.5
        %vm667 = vcmp.gt.f32.partialorder %v651, 0.5
        %vm668 = vcmp.gt.f32.partialorder %v652, 0.5
        %vm669 = vcmp.gt.f32.partialorder %v653, 0.5
        %v670 = vsel %vm654, 1, 0
        %v671 = vsel %vm655, 1, 0
        %v672 = vsel %vm656, 1, 0
        %v673 = vsel %vm657, 1, 0
        %v674 = vsel %vm658, 1, 0
        %v675 = vsel %vm659, 1, 0
        %v676 = vsel %vm660, 1, 0
        %v677 = vsel %vm661, 1, 0
        %v678 = vsel %vm662, 1, 0
        %v679 = vsel %vm663, 1, 0
        %v680 = vsel %vm664, 1, 0
        %v681 = vsel %vm665, 1, 0
        %v682 = vsel %vm666, 1, 0
        %v683 = vsel %vm667, 1, 0
        %v684 = vsel %vm668, 1, 0
        %v685 = vsel %vm669, 1, 0
        %v686 = vcvt.s32.f32 %v670
        %v687 = vcvt.s32.f32 %v671
        %v688 = vcvt.s32.f32 %v672
        %v689 = vcvt.s32.f32 %v673
        %v690 = vcvt.s32.f32 %v674
        %v691 = vcvt.s32.f32 %v675
        %v692 = vcvt.s32.f32 %v676
        %v693 = vcvt.s32.f32 %v677
        %v694 = vcvt.s32.f32 %v678
        %v695 = vcvt.s32.f32 %v679
        %v696 = vcvt.s32.f32 %v680
        %v697 = vcvt.s32.f32 %v681
        %v698 = vcvt.s32.f32 %v682
        %v699 = vcvt.s32.f32 %v683
        %v700 = vcvt.s32.f32 %v684
        %v701 = vcvt.s32.f32 %v685
        %v702 = vld [vmem:[%s405] sm:$0xff]
        %v703 = vld [vmem:[%s405 + $0x8] sm:$0xff]
        %v704 = vld [vmem:[%s405 + $0x10] sm:$0xff]
        %v705 = vld [vmem:[%s405 + $0x18] sm:$0xff]
        %v706 = vunpack.c.0.s8 %v702
        %v707 = vunpack.c.1.s8 %v702
        %v708 = vunpack.c.2.s8 %v702
        %v709 = vunpack.c.3.s8 %v702
        %v710 = vunpack.c.0.s8 %v703
        %v711 = vunpack.c.1.s8 %v703
        %v712 = vunpack.c.2.s8 %v703
        %v713 = vunpack.c.3.s8 %v703
        %v714 = vunpack.c.0.s8 %v704
        %v715 = vunpack.c.1.s8 %v704
        %v716 = vunpack.c.2.s8 %v704
        %v717 = vunpack.c.3.s8 %v704
        %v718 = vunpack.c.0.s8 %v705
        %v719 = vunpack.c.1.s8 %v705
        %v720 = vunpack.c.2.s8 %v705
        %v721 = vunpack.c.3.s8 %v705
        %v722 = vcvt.s32.f32 %v706
        %v723 = vcvt.s32.f32 %v707
        %v724 = vcvt.s32.f32 %v708
        %v725 = vcvt.s32.f32 %v709
        %v726 = vcvt.s32.f32 %v710
        %v727 = vcvt.s32.f32 %v711
        %v728 = vcvt.s32.f32 %v712
        %v729 = vcvt.s32.f32 %v713
        %v730 = vcvt.s32.f32 %v714
        %v731 = vcvt.s32.f32 %v715
        %v732 = vcvt.s32.f32 %v716
        %v733 = vcvt.s32.f32 %v717
        %v734 = vcvt.s32.f32 %v718
        %v735 = vcvt.s32.f32 %v719
        %v736 = vcvt.s32.f32 %v720
        %v737 = vcvt.s32.f32 %v721
        %v738 = vld [vmem:[%s496] sm:$0xff]
        %v739 = vld [vmem:[%s496 + $0x8] sm:$0xff]
        %v740 = vld [vmem:[%s496 + $0x10] sm:$0xff]
        %v741 = vld [vmem:[%s496 + $0x18] sm:$0xff]
        %v742 = vld [vmem:[%s496 + $0x20] sm:$0xff]
        %v743 = vld [vmem:[%s496 + $0x28] sm:$0xff]
        %v744 = vld [vmem:[%s496 + $0x30] sm:$0xff]
        %v745 = vld [vmem:[%s496 + $0x38] sm:$0xff]
        %v746 = vld [vmem:[%s496 + $0x40] sm:$0xff]
        %v747 = vld [vmem:[%s496 + $0x48] sm:$0xff]
        %v748 = vld [vmem:[%s496 + $0x50] sm:$0xff]
        %v749 = vld [vmem:[%s496 + $0x58] sm:$0xff]
        %v750 = vld [vmem:[%s496 + $0x60] sm:$0xff]
        %v751 = vld [vmem:[%s496 + $0x68] sm:$0xff]
        %v752 = vld [vmem:[%s496 + $0x70] sm:$0xff]
        %v753 = vld [vmem:[%s496 + $0x78] sm:$0xff]
        %v754 = vld [vmem:[%s503] sm:$0x1]
        %756 = vset.pattern.permute.xlu0 0
        %757 = vperm.xlu0 %756, %v738
        %v758 = vpop.permute.xlu0 %757
        %761 = vset.pattern.permute.xlu0 0
        %762 = vperm.xlu0 %761, %v739
        %v763 = vpop.permute.xlu0 %762
        %766 = vset.pattern.permute.xlu0 0
        %767 = vperm.xlu0 %766, %v740
        %v768 = vpop.permute.xlu0 %767
        %771 = vset.pattern.permute.xlu0 0
        %772 = vperm.xlu0 %771, %v741
        %v773 = vpop.permute.xlu0 %772
        %776 = vset.pattern.permute.xlu0 0
        %777 = vperm.xlu0 %776, %v742
        %v778 = vpop.permute.xlu0 %777
        %781 = vset.pattern.permute.xlu0 0
        %782 = vperm.xlu0 %781, %v743
        %v783 = vpop.permute.xlu0 %782
        %786 = vset.pattern.permute.xlu0 0
        %787 = vperm.xlu0 %786, %v744
        %v788 = vpop.permute.xlu0 %787
        %791 = vset.pattern.permute.xlu0 0
        %792 = vperm.xlu0 %791, %v745
        %v793 = vpop.permute.xlu0 %792
        %796 = vset.pattern.permute.xlu0 0
        %797 = vperm.xlu0 %796, %v746
        %v798 = vpop.permute.xlu0 %797
        %801 = vset.pattern.permute.xlu0 0
        %802 = vperm.xlu0 %801, %v747
        %v803 = vpop.permute.xlu0 %802
        %806 = vset.pattern.permute.xlu0 0
        %807 = vperm.xlu0 %806, %v748
        %v808 = vpop.permute.xlu0 %807
        %811 = vset.pattern.permute.xlu0 0
        %812 = vperm.xlu0 %811, %v749
        %v813 = vpop.permute.xlu0 %812
        %816 = vset.pattern.permute.xlu0 0
        %817 = vperm.xlu0 %816, %v750
        %v818 = vpop.permute.xlu0 %817
        %821 = vset.pattern.permute.xlu0 0
        %822 = vperm.xlu0 %821, %v751
        %v823 = vpop.permute.xlu0 %822
        %826 = vset.pattern.permute.xlu0 0
        %827 = vperm.xlu0 %826, %v752
        %v828 = vpop.permute.xlu0 %827
        %831 = vset.pattern.permute.xlu0 0
        %832 = vperm.xlu0 %831, %v753
        %v833 = vpop.permute.xlu0 %832
        %v836 = vperm.slane %v754, 0
        %v838 = vmul.f32 %v758, %v836
        %v839 = vmul.f32 %v763, %v836
        %v840 = vmul.f32 %v768, %v836
        %v841 = vmul.f32 %v773, %v836
        %v842 = vmul.f32 %v778, %v836
        %v843 = vmul.f32 %v783, %v836
        %v844 = vmul.f32 %v788, %v836
        %v845 = vmul.f32 %v793, %v836
        %v846 = vmul.f32 %v798, %v836
        %v847 = vmul.f32 %v803, %v836
        %v848 = vmul.f32 %v808, %v836
        %v849 = vmul.f32 %v813, %v836
        %v850 = vmul.f32 %v818, %v836
        %v851 = vmul.f32 %v823, %v836
        %v852 = vmul.f32 %v828, %v836
        %v853 = vmul.f32 %v833, %v836
        %v854 = vmul.f32 %v686, %v838
        %v855 = vmul.f32 %v687, %v839
        %v856 = vmul.f32 %v688, %v840
        %v857 = vmul.f32 %v689, %v841
        %v858 = vmul.f32 %v690, %v842
        %v859 = vmul.f32 %v691, %v843
        %v860 = vmul.f32 %v692, %v844
        %v861 = vmul.f32 %v693, %v845
        %v862 = vmul.f32 %v694, %v846
        %v863 = vmul.f32 %v695, %v847
        %v864 = vmul.f32 %v696, %v848
        %v865 = vmul.f32 %v697, %v849
        %v866 = vmul.f32 %v698, %v850
        %v867 = vmul.f32 %v699, %v851
        %v868 = vmul.f32 %v700, %v852
        %v869 = vmul.f32 %v701, %v853
        %v870 = vadd.f32 %v622, 1e-06
        %v871 = vadd.f32 %v623, 1e-06
        %v872 = vadd.f32 %v624, 1e-06
        %v873 = vadd.f32 %v625, 1e-06
        %v874 = vadd.f32 %v626, 1e-06
        %v875 = vadd.f32 %v627, 1e-06
        %v876 = vadd.f32 %v628, 1e-06
        %v877 = vadd.f32 %v629, 1e-06
        %v878 = vadd.f32 %v630, 1e-06
        %v879 = vadd.f32 %v631, 1e-06
        %v880 = vadd.f32 %v632, 1e-06
        %v881 = vadd.f32 %v633, 1e-06
        %v882 = vadd.f32 %v634, 1e-06
        %v883 = vadd.f32 %v635, 1e-06
        %v884 = vadd.f32 %v636, 1e-06
        %v885 = vadd.f32 %v637, 1e-06
        %v886 = vmul.f32 %v870, %v606
        %v887 = vmul.f32 %v871, %v607
        %v888 = vmul.f32 %v872, %v608
        %v889 = vmul.f32 %v873, %v609
        %v890 = vmul.f32 %v874, %v610
        %v891 = vmul.f32 %v875, %v611
        %v892 = vmul.f32 %v876, %v612
        %v893 = vmul.f32 %v877, %v613
        %v894 = vmul.f32 %v878, %v614
        %v895 = vmul.f32 %v879, %v615
        %v896 = vmul.f32 %v880, %v616
        %v897 = vmul.f32 %v881, %v617
        %v898 = vmul.f32 %v882, %v618
        %v899 = vmul.f32 %v883, %v619
        %v900 = vmul.f32 %v884, %v620
        %v901 = vmul.f32 %v885, %v621
        %v902 = vlog2.pop %v886
        %v903 = vmul.f32 %v902, 0.6931472
        %v904 = vlog2.pop %v887
        %v905 = vmul.f32 %v904, 0.6931472
        %v906 = vlog2.pop %v888
        %v907 = vmul.f32 %v906, 0.6931472
        %v908 = vlog2.pop %v889
        %v909 = vmul.f32 %v908, 0.6931472
        %v910 = vlog2.pop %v890
        %v911 = vmul.f32 %v910, 0.6931472
        %v912 = vlog2.pop %v891
        %v913 = vmul.f32 %v912, 0.6931472
        %v914 = vlog2.pop %v892
        %v915 = vmul.f32 %v914, 0.6931472
        %v916 = vlog2.pop %v893
        %v917 = vmul.f32 %v916, 0.6931472
        %v918 = vlog2.pop %v894
        %v919 = vmul.f32 %v918, 0.6931472
        %v920 = vlog2.pop %v895
        %v921 = vmul.f32 %v920, 0.6931472
        %v922 = vlog2.pop %v896
        %v923 = vmul.f32 %v922, 0.6931472
        %v924 = vlog2.pop %v897
        %v925 = vmul.f32 %v924, 0.6931472
        %v926 = vlog2.pop %v898
        %v927 = vmul.f32 %v926, 0.6931472
        %v928 = vlog2.pop %v899
        %v929 = vmul.f32 %v928, 0.6931472
        %v930 = vlog2.pop %v900
        %v931 = vmul.f32 %v930, 0.6931472
        %v932 = vlog2.pop %v901
        %v933 = vmul.f32 %v932, 0.6931472
        %v934 = vld [vmem:[#allocation2] sm:$0xff]
        %v935 = vld [vmem:[#allocation2 + $0x8] sm:$0xff]
        %v936 = vld [vmem:[#allocation2 + $0x10] sm:$0xff]
        %v937 = vld [vmem:[#allocation2 + $0x18] sm:$0xff]
        %v938 = vld [vmem:[#allocation2 + $0x20] sm:$0xff]
        %v939 = vld [vmem:[#allocation2 + $0x28] sm:$0xff]
        %v940 = vld [vmem:[#allocation2 + $0x30] sm:$0xff]
        %v941 = vld [vmem:[#allocation2 + $0x38] sm:$0xff]
        %v942 = vld [vmem:[#allocation2 + $0x40] sm:$0xff]
        %v943 = vld [vmem:[#allocation2 + $0x48] sm:$0xff]
        %v944 = vld [vmem:[#allocation2 + $0x50] sm:$0xff]
        %v945 = vld [vmem:[#allocation2 + $0x58] sm:$0xff]
        %v946 = vld [vmem:[#allocation2 + $0x60] sm:$0xff]
        %v947 = vld [vmem:[#allocation2 + $0x68] sm:$0xff]
        %v948 = vld [vmem:[#allocation2 + $0x70] sm:$0xff]
        %v949 = vld [vmem:[#allocation2 + $0x78] sm:$0xff]
        %v950 = vmul.f32 %v854, -0.25
        %v951 = vmul.f32 %v855, -0.25
        %v952 = vmul.f32 %v856, -0.25
        %v953 = vmul.f32 %v857, -0.25
        %v954 = vmul.f32 %v858, -0.25
        %v955 = vmul.f32 %v859, -0.25
        %v956 = vmul.f32 %v860, -0.25
        %v957 = vmul.f32 %v861, -0.25
        %v958 = vmul.f32 %v862, -0.25
        %v959 = vmul.f32 %v863, -0.25
        %v960 = vmul.f32 %v864, -0.25
        %v961 = vmul.f32 %v865, -0.25
        %v962 = vmul.f32 %v866, -0.25
        %v963 = vmul.f32 %v867, -0.25
        %v964 = vmul.f32 %v868, -0.25
        %v965 = vmul.f32 %v869, -0.25
        %v966 = vmul.f32 %v950, %v903
        %v967 = vmul.f32 %v951, %v905
        %v968 = vmul.f32 %v952, %v907
        %v969 = vmul.f32 %v953, %v909
        %v970 = vmul.f32 %v954, %v911
        %v971 = vmul.f32 %v955, %v913
        %v972 = vmul.f32 %v956, %v915
        %v973 = vmul.f32 %v957, %v917
        %v974 = vmul.f32 %v958, %v919
        %v975 = vmul.f32 %v959, %v921
        %v976 = vmul.f32 %v960, %v923
        %v977 = vmul.f32 %v961, %v925
        %v978 = vmul.f32 %v962, %v927
        %v979 = vmul.f32 %v963, %v929
        %v980 = vmul.f32 %v964, %v931
        %v981 = vmul.f32 %v965, %v933
        %v982 = vadd.f32 %v934, %v966
        %v983 = vadd.f32 %v935, %v967
        %v984 = vadd.f32 %v936, %v968
        %v985 = vadd.f32 %v937, %v969
        %v986 = vadd.f32 %v938, %v970
        %v987 = vadd.f32 %v939, %v971
        %v988 = vadd.f32 %v940, %v972
        %v989 = vadd.f32 %v941, %v973
        %v990 = vadd.f32 %v942, %v974
        %v991 = vadd.f32 %v943, %v975
        %v992 = vadd.f32 %v944, %v976
        %v993 = vadd.f32 %v945, %v977
        %v994 = vadd.f32 %v946, %v978
        %v995 = vadd.f32 %v947, %v979
        %v996 = vadd.f32 %v948, %v980
        %v997 = vadd.f32 %v949, %v981
        %998 = vst [vmem:[#allocation2] sm:$0xff] %v982
        %999 = vst [vmem:[#allocation2 + $0x8] sm:$0xff] %v983
        %1000 = vst [vmem:[#allocation2 + $0x10] sm:$0xff] %v984
        %1001 = vst [vmem:[#allocation2 + $0x18] sm:$0xff] %v985
        %1002 = vst [vmem:[#allocation2 + $0x20] sm:$0xff] %v986
        %1003 = vst [vmem:[#allocation2 + $0x28] sm:$0xff] %v987
        %1004 = vst [vmem:[#allocation2 + $0x30] sm:$0xff] %v988
        %1005 = vst [vmem:[#allocation2 + $0x38] sm:$0xff] %v989
        %1006 = vst [vmem:[#allocation2 + $0x40] sm:$0xff] %v990
        %1007 = vst [vmem:[#allocation2 + $0x48] sm:$0xff] %v991
        %1008 = vst [vmem:[#allocation2 + $0x50] sm:$0xff] %v992
        %1009 = vst [vmem:[#allocation2 + $0x58] sm:$0xff] %v993
        %1010 = vst [vmem:[#allocation2 + $0x60] sm:$0xff] %v994
        %1011 = vst [vmem:[#allocation2 + $0x68] sm:$0xff] %v995
        %1012 = vst [vmem:[#allocation2 + $0x70] sm:$0xff] %v996
        %1013 = vst [vmem:[#allocation2 + $0x78] sm:$0xff] %v997
        %v1014 = vld [vmem:[#allocation3] sm:$0xff]
        %v1015 = vld [vmem:[#allocation3 + $0x8] sm:$0xff]
        %v1016 = vld [vmem:[#allocation3 + $0x10] sm:$0xff]
        %v1017 = vld [vmem:[#allocation3 + $0x18] sm:$0xff]
        %v1018 = vld [vmem:[#allocation3 + $0x20] sm:$0xff]
        %v1019 = vld [vmem:[#allocation3 + $0x28] sm:$0xff]
        %v1020 = vld [vmem:[#allocation3 + $0x30] sm:$0xff]
        %v1021 = vld [vmem:[#allocation3 + $0x38] sm:$0xff]
        %v1022 = vld [vmem:[#allocation3 + $0x40] sm:$0xff]
        %v1023 = vld [vmem:[#allocation3 + $0x48] sm:$0xff]
        %v1024 = vld [vmem:[#allocation3 + $0x50] sm:$0xff]
        %v1025 = vld [vmem:[#allocation3 + $0x58] sm:$0xff]
        %v1026 = vld [vmem:[#allocation3 + $0x60] sm:$0xff]
        %v1027 = vld [vmem:[#allocation3 + $0x68] sm:$0xff]
        %v1028 = vld [vmem:[#allocation3 + $0x70] sm:$0xff]
        %v1029 = vld [vmem:[#allocation3 + $0x78] sm:$0xff]
        %v1030 = vmul.f32 %v722, %v838
        %v1031 = vmul.f32 %v723, %v839
        %v1032 = vmul.f32 %v724, %v840
        %v1033 = vmul.f32 %v725, %v841
        %v1034 = vmul.f32 %v726, %v842
        %v1035 = vmul.f32 %v727, %v843
        %v1036 = vmul.f32 %v728, %v844
        %v1037 = vmul.f32 %v729, %v845
        %v1038 = vmul.f32 %v730, %v846
        %v1039 = vmul.f32 %v731, %v847
        %v1040 = vmul.f32 %v732, %v848
        %v1041 = vmul.f32 %v733, %v849
        %v1042 = vmul.f32 %v734, %v850
        %v1043 = vmul.f32 %v735, %v851
        %v1044 = vmul.f32 %v736, %v852
        %v1045 = vmul.f32 %v737, %v853
        %v1046 = vmul.f32 %v1030, -0.25
        %v1047 = vmul.f32 %v1031, -0.25
        %v1048 = vmul.f32 %v1032, -0.25
        %v1049 = vmul.f32 %v1033, -0.25
        %v1050 = vmul.f32 %v1034, -0.25
        %v1051 = vmul.f32 %v1035, -0.25
        %v1052 = vmul.f32 %v1036, -0.25
        %v1053 = vmul.f32 %v1037, -0.25
        %v1054 = vmul.f32 %v1038, -0.25
        %v1055 = vmul.f32 %v1039, -0.25
        %v1056 = vmul.f32 %v1040, -0.25
        %v1057 = vmul.f32 %v1041, -0.25
        %v1058 = vmul.f32 %v1042, -0.25
        %v1059 = vmul.f32 %v1043, -0.25
        %v1060 = vmul.f32 %v1044, -0.25
        %v1061 = vmul.f32 %v1045, -0.25
        %v1062 = vsub.f32 1.0, %v622
        %v1063 = vsub.f32 1.0, %v623
        %v1064 = vsub.f32 1.0, %v624
        %v1065 = vsub.f32 1.0, %v625
        %v1066 = vsub.f32 1.0, %v626
        %v1067 = vsub.f32 1.0, %v627
        %v1068 = vsub.f32 1.0, %v628
        %v1069 = vsub.f32 1.0, %v629
        %v1070 = vsub.f32 1.0, %v630
        %v1071 = vsub.f32 1.0, %v631
        %v1072 = vsub.f32 1.0, %v632
        %v1073 = vsub.f32 1.0, %v633
        %v1074 = vsub.f32 1.0, %v634
        %v1075 = vsub.f32 1.0, %v635
        %v1076 = vsub.f32 1.0, %v636
        %v1077 = vsub.f32 1.0, %v637
        %v1078 = vadd.f32 %v1062, 1e-06
        %v1079 = vadd.f32 %v1063, 1e-06
        %v1080 = vadd.f32 %v1064, 1e-06
        %v1081 = vadd.f32 %v1065, 1e-06
        %v1082 = vadd.f32 %v1066, 1e-06
        %v1083 = vadd.f32 %v1067, 1e-06
        %v1084 = vadd.f32 %v1068, 1e-06
        %v1085 = vadd.f32 %v1069, 1e-06
        %v1086 = vadd.f32 %v1070, 1e-06
        %v1087 = vadd.f32 %v1071, 1e-06
        %v1088 = vadd.f32 %v1072, 1e-06
        %v1089 = vadd.f32 %v1073, 1e-06
        %v1090 = vadd.f32 %v1074, 1e-06
        %v1091 = vadd.f32 %v1075, 1e-06
        %v1092 = vadd.f32 %v1076, 1e-06
        %v1093 = vadd.f32 %v1077, 1e-06
        %v1094 = vlog2.pop %v1078
        %v1095 = vmul.f32 %v1094, 0.6931472
        %v1096 = vlog2.pop %v1079
        %v1097 = vmul.f32 %v1096, 0.6931472
        %v1098 = vlog2.pop %v1080
        %v1099 = vmul.f32 %v1098, 0.6931472
        %v1100 = vlog2.pop %v1081
        %v1101 = vmul.f32 %v1100, 0.6931472
        %v1102 = vlog2.pop %v1082
        %v1103 = vmul.f32 %v1102, 0.6931472
        %v1104 = vlog2.pop %v1083
        %v1105 = vmul.f32 %v1104, 0.6931472
        %v1106 = vlog2.pop %v1084
        %v1107 = vmul.f32 %v1106, 0.6931472
        %v1108 = vlog2.pop %v1085
        %v1109 = vmul.f32 %v1108, 0.6931472
        %v1110 = vlog2.pop %v1086
        %v1111 = vmul.f32 %v1110, 0.6931472
        %v1112 = vlog2.pop %v1087
        %v1113 = vmul.f32 %v1112, 0.6931472
        %v1114 = vlog2.pop %v1088
        %v1115 = vmul.f32 %v1114, 0.6931472
        %v1116 = vlog2.pop %v1089
        %v1117 = vmul.f32 %v1116, 0.6931472
        %v1118 = vlog2.pop %v1090
        %v1119 = vmul.f32 %v1118, 0.6931472
        %v1120 = vlog2.pop %v1091
        %v1121 = vmul.f32 %v1120, 0.6931472
        %v1122 = vlog2.pop %v1092
        %v1123 = vmul.f32 %v1122, 0.6931472
        %v1124 = vlog2.pop %v1093
        %v1125 = vmul.f32 %v1124, 0.6931472
        %v1126 = vmul.f32 %v1046, %v1095
        %v1127 = vmul.f32 %v1047, %v1097
        %v1128 = vmul.f32 %v1048, %v1099
        %v1129 = vmul.f32 %v1049, %v1101
        %v1130 = vmul.f32 %v1050, %v1103
        %v1131 = vmul.f32 %v1051, %v1105
        %v1132 = vmul.f32 %v1052, %v1107
        %v1133 = vmul.f32 %v1053, %v1109
        %v1134 = vmul.f32 %v1054, %v1111
        %v1135 = vmul.f32 %v1055, %v1113
        %v1136 = vmul.f32 %v1056, %v1115
        %v1137 = vmul.f32 %v1057, %v1117
        %v1138 = vmul.f32 %v1058, %v1119
        %v1139 = vmul.f32 %v1059, %v1121
        %v1140 = vmul.f32 %v1060, %v1123
        %v1141 = vmul.f32 %v1061, %v1125
        %v1142 = vadd.f32 %v1014, %v1126
        %v1143 = vadd.f32 %v1015, %v1127
        %v1144 = vadd.f32 %v1016, %v1128
        %v1145 = vadd.f32 %v1017, %v1129
        %v1146 = vadd.f32 %v1018, %v1130
        %v1147 = vadd.f32 %v1019, %v1131
        %v1148 = vadd.f32 %v1020, %v1132
        %v1149 = vadd.f32 %v1021, %v1133
        %v1150 = vadd.f32 %v1022, %v1134
        %v1151 = vadd.f32 %v1023, %v1135
        %v1152 = vadd.f32 %v1024, %v1136
        %v1153 = vadd.f32 %v1025, %v1137
        %v1154 = vadd.f32 %v1026, %v1138
        %v1155 = vadd.f32 %v1027, %v1139
        %v1156 = vadd.f32 %v1028, %v1140
        %v1157 = vadd.f32 %v1029, %v1141
        %1158 = vst [vmem:[#allocation3] sm:$0xff] %v1142
        %1159 = vst [vmem:[#allocation3 + $0x8] sm:$0xff] %v1143
        %1160 = vst [vmem:[#allocation3 + $0x10] sm:$0xff] %v1144
        %1161 = vst [vmem:[#allocation3 + $0x18] sm:$0xff] %v1145
        %1162 = vst [vmem:[#allocation3 + $0x20] sm:$0xff] %v1146
        %1163 = vst [vmem:[#allocation3 + $0x28] sm:$0xff] %v1147
        %1164 = vst [vmem:[#allocation3 + $0x30] sm:$0xff] %v1148
        %1165 = vst [vmem:[#allocation3 + $0x38] sm:$0xff] %v1149
        %1166 = vst [vmem:[#allocation3 + $0x40] sm:$0xff] %v1150
        %1167 = vst [vmem:[#allocation3 + $0x48] sm:$0xff] %v1151
        %1168 = vst [vmem:[#allocation3 + $0x50] sm:$0xff] %v1152
        %1169 = vst [vmem:[#allocation3 + $0x58] sm:$0xff] %v1153
        %1170 = vst [vmem:[#allocation3 + $0x60] sm:$0xff] %v1154
        %1171 = vst [vmem:[#allocation3 + $0x68] sm:$0xff] %v1155
        %1172 = vst [vmem:[#allocation3 + $0x70] sm:$0xff] %v1156
        %1173 = vst [vmem:[#allocation3 + $0x78] sm:$0xff] %v1157
        %v1174 = vld [vmem:[#allocation4] sm:$0xff]
        %v1175 = vld [vmem:[#allocation4 + $0x8] sm:$0xff]
        %v1176 = vld [vmem:[#allocation4 + $0x10] sm:$0xff]
        %v1177 = vld [vmem:[#allocation4 + $0x18] sm:$0xff]
        %v1178 = vld [vmem:[#allocation4 + $0x20] sm:$0xff]
        %v1179 = vld [vmem:[#allocation4 + $0x28] sm:$0xff]
        %v1180 = vld [vmem:[#allocation4 + $0x30] sm:$0xff]
        %v1181 = vld [vmem:[#allocation4 + $0x38] sm:$0xff]
        %v1182 = vld [vmem:[#allocation4 + $0x40] sm:$0xff]
        %v1183 = vld [vmem:[#allocation4 + $0x48] sm:$0xff]
        %v1184 = vld [vmem:[#allocation4 + $0x50] sm:$0xff]
        %v1185 = vld [vmem:[#allocation4 + $0x58] sm:$0xff]
        %v1186 = vld [vmem:[#allocation4 + $0x60] sm:$0xff]
        %v1187 = vld [vmem:[#allocation4 + $0x68] sm:$0xff]
        %v1188 = vld [vmem:[#allocation4 + $0x70] sm:$0xff]
        %v1189 = vld [vmem:[#allocation4 + $0x78] sm:$0xff]
        %v1190 = vadd.f32 %v1174, %v686
        %v1191 = vadd.f32 %v1175, %v687
        %v1192 = vadd.f32 %v1176, %v688
        %v1193 = vadd.f32 %v1177, %v689
        %v1194 = vadd.f32 %v1178, %v690
        %v1195 = vadd.f32 %v1179, %v691
        %v1196 = vadd.f32 %v1180, %v692
        %v1197 = vadd.f32 %v1181, %v693
        %v1198 = vadd.f32 %v1182, %v694
        %v1199 = vadd.f32 %v1183, %v695
        %v1200 = vadd.f32 %v1184, %v696
        %v1201 = vadd.f32 %v1185, %v697
        %v1202 = vadd.f32 %v1186, %v698
        %v1203 = vadd.f32 %v1187, %v699
        %v1204 = vadd.f32 %v1188, %v700
        %v1205 = vadd.f32 %v1189, %v701
        %1206 = vst [vmem:[#allocation4] sm:$0xff] %v1190
        %1207 = vst [vmem:[#allocation4 + $0x8] sm:$0xff] %v1191
        %1208 = vst [vmem:[#allocation4 + $0x10] sm:$0xff] %v1192
        %1209 = vst [vmem:[#allocation4 + $0x18] sm:$0xff] %v1193
        %1210 = vst [vmem:[#allocation4 + $0x20] sm:$0xff] %v1194
        %1211 = vst [vmem:[#allocation4 + $0x28] sm:$0xff] %v1195
        %1212 = vst [vmem:[#allocation4 + $0x30] sm:$0xff] %v1196
        %1213 = vst [vmem:[#allocation4 + $0x38] sm:$0xff] %v1197
        %1214 = vst [vmem:[#allocation4 + $0x40] sm:$0xff] %v1198
        %1215 = vst [vmem:[#allocation4 + $0x48] sm:$0xff] %v1199
        %1216 = vst [vmem:[#allocation4 + $0x50] sm:$0xff] %v1200
        %1217 = vst [vmem:[#allocation4 + $0x58] sm:$0xff] %v1201
        %1218 = vst [vmem:[#allocation4 + $0x60] sm:$0xff] %v1202
        %1219 = vst [vmem:[#allocation4 + $0x68] sm:$0xff] %v1203
        %1220 = vst [vmem:[#allocation4 + $0x70] sm:$0xff] %v1204
        %1221 = vst [vmem:[#allocation4 + $0x78] sm:$0xff] %v1205
        %v1222 = vld [vmem:[#allocation5] sm:$0xff]
        %v1223 = vld [vmem:[#allocation5 + $0x8] sm:$0xff]
        %v1224 = vld [vmem:[#allocation5 + $0x10] sm:$0xff]
        %v1225 = vld [vmem:[#allocation5 + $0x18] sm:$0xff]
        %v1226 = vld [vmem:[#allocation5 + $0x20] sm:$0xff]
        %v1227 = vld [vmem:[#allocation5 + $0x28] sm:$0xff]
        %v1228 = vld [vmem:[#allocation5 + $0x30] sm:$0xff]
        %v1229 = vld [vmem:[#allocation5 + $0x38] sm:$0xff]
        %v1230 = vld [vmem:[#allocation5 + $0x40] sm:$0xff]
        %v1231 = vld [vmem:[#allocation5 + $0x48] sm:$0xff]
        %v1232 = vld [vmem:[#allocation5 + $0x50] sm:$0xff]
        %v1233 = vld [vmem:[#allocation5 + $0x58] sm:$0xff]
        %v1234 = vld [vmem:[#allocation5 + $0x60] sm:$0xff]
        %v1235 = vld [vmem:[#allocation5 + $0x68] sm:$0xff]
        %v1236 = vld [vmem:[#allocation5 + $0x70] sm:$0xff]
        %v1237 = vld [vmem:[#allocation5 + $0x78] sm:$0xff]
        %v1238 = vadd.f32 %v1222, %v722
        %v1239 = vadd.f32 %v1223, %v723
        %v1240 = vadd.f32 %v1224, %v724
        %v1241 = vadd.f32 %v1225, %v725
        %v1242 = vadd.f32 %v1226, %v726
        %v1243 = vadd.f32 %v1227, %v727
        %v1244 = vadd.f32 %v1228, %v728
        %v1245 = vadd.f32 %v1229, %v729
        %v1246 = vadd.f32 %v1230, %v730
        %v1247 = vadd.f32 %v1231, %v731
        %v1248 = vadd.f32 %v1232, %v732
        %v1249 = vadd.f32 %v1233, %v733
        %v1250 = vadd.f32 %v1234, %v734
        %v1251 = vadd.f32 %v1235, %v735
        %v1252 = vadd.f32 %v1236, %v736
        %v1253 = vadd.f32 %v1237, %v737
        %1254 = vst [vmem:[#allocation5] sm:$0xff] %v1238
        %1255 = vst [vmem:[#allocation5 + $0x8] sm:$0xff] %v1239
        %1256 = vst [vmem:[#allocation5 + $0x10] sm:$0xff] %v1240
        %1257 = vst [vmem:[#allocation5 + $0x18] sm:$0xff] %v1241
        %1258 = vst [vmem:[#allocation5 + $0x20] sm:$0xff] %v1242
        %1259 = vst [vmem:[#allocation5 + $0x28] sm:$0xff] %v1243
        %1260 = vst [vmem:[#allocation5 + $0x30] sm:$0xff] %v1244
        %1261 = vst [vmem:[#allocation5 + $0x38] sm:$0xff] %v1245
        %1262 = vst [vmem:[#allocation5 + $0x40] sm:$0xff] %v1246
        %1263 = vst [vmem:[#allocation5 + $0x48] sm:$0xff] %v1247
        %1264 = vst [vmem:[#allocation5 + $0x50] sm:$0xff] %v1248
        %1265 = vst [vmem:[#allocation5 + $0x58] sm:$0xff] %v1249
        %1266 = vst [vmem:[#allocation5 + $0x60] sm:$0xff] %v1250
        %1267 = vst [vmem:[#allocation5 + $0x68] sm:$0xff] %v1251
        %1268 = vst [vmem:[#allocation5 + $0x70] sm:$0xff] %v1252
        %1269 = vst [vmem:[#allocation5 + $0x78] sm:$0xff] %v1253
        // Predicated region
        $region61: #{tpu_custom_call.1} parent=43 // pred_check
          _
        $region62: #{tpu_custom_call.1} parent=43 // pred_check_branch
          %1271 = sbr.rel (%p506) target = $region64
        $region63: #{tpu_custom_call.1} parent=43 // pred_region
          %v1272 = vld [vmem:[#allocation2] sm:$0xff]
          %v1273 = vld [vmem:[#allocation2 + $0x8] sm:$0xff]
          %v1274 = vld [vmem:[#allocation2 + $0x10] sm:$0xff]
          %v1275 = vld [vmem:[#allocation2 + $0x18] sm:$0xff]
          %v1276 = vld [vmem:[#allocation2 + $0x20] sm:$0xff]
          %v1277 = vld [vmem:[#allocation2 + $0x28] sm:$0xff]
          %v1278 = vld [vmem:[#allocation2 + $0x30] sm:$0xff]
          %v1279 = vld [vmem:[#allocation2 + $0x38] sm:$0xff]
          %v1280 = vld [vmem:[#allocation2 + $0x40] sm:$0xff]
          %v1281 = vld [vmem:[#allocation2 + $0x48] sm:$0xff]
          %v1282 = vld [vmem:[#allocation2 + $0x50] sm:$0xff]
          %v1283 = vld [vmem:[#allocation2 + $0x58] sm:$0xff]
          %v1284 = vld [vmem:[#allocation2 + $0x60] sm:$0xff]
          %v1285 = vld [vmem:[#allocation2 + $0x68] sm:$0xff]
          %v1286 = vld [vmem:[#allocation2 + $0x70] sm:$0xff]
          %v1287 = vld [vmem:[#allocation2 + $0x78] sm:$0xff]
          %v1288 = vadd.f32 %v1272, %v1273
          %v1289 = vadd.f32 %v1288, %v1274
          %v1290 = vadd.f32 %v1289, %v1275
          %v1291 = vadd.f32 %v1290, %v1276
          %v1292 = vadd.f32 %v1291, %v1277
          %v1293 = vadd.f32 %v1292, %v1278
          %v1294 = vadd.f32 %v1293, %v1279
          %v1295 = vadd.f32 %v1294, %v1280
          %v1296 = vadd.f32 %v1295, %v1281
          %v1297 = vadd.f32 %v1296, %v1282
          %v1298 = vadd.f32 %v1297, %v1283
          %v1299 = vadd.f32 %v1298, %v1284
          %v1300 = vadd.f32 %v1299, %v1285
          %v1301 = vadd.f32 %v1300, %v1286
          %v1302 = vadd.f32 %v1301, %v1287
          %1303 = vadd.xlane.f32.xlu0 %v1302
          %v1304 = vpop.xlane.xlu0 %1303
          %v1305 = vrot.slane %v1304, 4
          %v1306 = vadd.f32 %v1304, %v1305
          %v1307 = vrot.slane %v1306, 2
          %v1308 = vadd.f32 %v1306, %v1307
          %v1309 = vrot.slane %v1308, 1
          %v1310 = vadd.f32 %v1308, %v1309
          %s1311 = vtos %v1310
          %v1312 = vld [vmem:[#allocation3] sm:$0xff]
          %v1313 = vld [vmem:[#allocation3 + $0x8] sm:$0xff]
          %v1314 = vld [vmem:[#allocation3 + $0x10] sm:$0xff]
          %v1315 = vld [vmem:[#allocation3 + $0x18] sm:$0xff]
          %v1316 = vld [vmem:[#allocation3 + $0x20] sm:$0xff]
          %v1317 = vld [vmem:[#allocation3 + $0x28] sm:$0xff]
          %v1318 = vld [vmem:[#allocation3 + $0x30] sm:$0xff]
          %v1319 = vld [vmem:[#allocation3 + $0x38] sm:$0xff]
          %v1320 = vld [vmem:[#allocation3 + $0x40] sm:$0xff]
          %v1321 = vld [vmem:[#allocation3 + $0x48] sm:$0xff]
          %v1322 = vld [vmem:[#allocation3 + $0x50] sm:$0xff]
          %v1323 = vld [vmem:[#allocation3 + $0x58] sm:$0xff]
          %v1324 = vld [vmem:[#allocation3 + $0x60] sm:$0xff]
          %v1325 = vld [vmem:[#allocation3 + $0x68] sm:$0xff]
          %v1326 = vld [vmem:[#allocation3 + $0x70] sm:$0xff]
          %v1327 = vld [vmem:[#allocation3 + $0x78] sm:$0xff]
          %v1328 = vadd.f32 %v1312, %v1313
          %v1329 = vadd.f32 %v1328, %v1314
          %v1330 = vadd.f32 %v1329, %v1315
          %v1331 = vadd.f32 %v1330, %v1316
          %v1332 = vadd.f32 %v1331, %v1317
          %v1333 = vadd.f32 %v1332, %v1318
          %v1334 = vadd.f32 %v1333, %v1319
          %v1335 = vadd.f32 %v1334, %v1320
          %v1336 = vadd.f32 %v1335, %v1321
          %v1337 = vadd.f32 %v1336, %v1322
          %v1338 = vadd.f32 %v1337, %v1323
          %v1339 = vadd.f32 %v1338, %v1324
          %v1340 = vadd.f32 %v1339, %v1325
          %v1341 = vadd.f32 %v1340, %v1326
          %v1342 = vadd.f32 %v1341, %v1327
          %1343 = vadd.xlane.f32.xlu0 %v1342
          %v1344 = vpop.xlane.xlu0 %1343
          %v1345 = vrot.slane %v1344, 4
          %v1346 = vadd.f32 %v1344, %v1345
          %v1347 = vrot.slane %v1346, 2
          %v1348 = vadd.f32 %v1346, %v1347
          %v1349 = vrot.slane %v1348, 1
          %v1350 = vadd.f32 %v1348, %v1349
          %s1351 = vtos %v1350
          %v1352 = vld [vmem:[#allocation4] sm:$0xff]
          %v1353 = vld [vmem:[#allocation4 + $0x8] sm:$0xff]
          %v1354 = vld [vmem:[#allocation4 + $0x10] sm:$0xff]
          %v1355 = vld [vmem:[#allocation4 + $0x18] sm:$0xff]
          %v1356 = vld [vmem:[#allocation4 + $0x20] sm:$0xff]
          %v1357 = vld [vmem:[#allocation4 + $0x28] sm:$0xff]
          %v1358 = vld [vmem:[#allocation4 + $0x30] sm:$0xff]
          %v1359 = vld [vmem:[#allocation4 + $0x38] sm:$0xff]
          %v1360 = vld [vmem:[#allocation4 + $0x40] sm:$0xff]
          %v1361 = vld [vmem:[#allocation4 + $0x48] sm:$0xff]
          %v1362 = vld [vmem:[#allocation4 + $0x50] sm:$0xff]
          %v1363 = vld [vmem:[#allocation4 + $0x58] sm:$0xff]
          %v1364 = vld [vmem:[#allocation4 + $0x60] sm:$0xff]
          %v1365 = vld [vmem:[#allocation4 + $0x68] sm:$0xff]
          %v1366 = vld [vmem:[#allocation4 + $0x70] sm:$0xff]
          %v1367 = vld [vmem:[#allocation4 + $0x78] sm:$0xff]
          %v1368 = vadd.f32 %v1352, %v1353
          %v1369 = vadd.f32 %v1368, %v1354
          %v1370 = vadd.f32 %v1369, %v1355
          %v1371 = vadd.f32 %v1370, %v1356
          %v1372 = vadd.f32 %v1371, %v1357
          %v1373 = vadd.f32 %v1372, %v1358
          %v1374 = vadd.f32 %v1373, %v1359
          %v1375 = vadd.f32 %v1374, %v1360
          %v1376 = vadd.f32 %v1375, %v1361
          %v1377 = vadd.f32 %v1376, %v1362
          %v1378 = vadd.f32 %v1377, %v1363
          %v1379 = vadd.f32 %v1378, %v1364
          %v1380 = vadd.f32 %v1379, %v1365
          %v1381 = vadd.f32 %v1380, %v1366
          %v1382 = vadd.f32 %v1381, %v1367
          %1383 = vadd.xlane.f32.xlu0 %v1382
          %v1384 = vpop.xlane.xlu0 %1383
          %v1385 = vrot.slane %v1384, 4
          %v1386 = vadd.f32 %v1384, %v1385
          %v1387 = vrot.slane %v1386, 2
          %v1388 = vadd.f32 %v1386, %v1387
          %v1389 = vrot.slane %v1388, 1
          %v1390 = vadd.f32 %v1388, %v1389
          %s1391 = vtos %v1390
          %v1392 = vld [vmem:[#allocation5] sm:$0xff]
          %v1393 = vld [vmem:[#allocation5 + $0x8] sm:$0xff]
          %v1394 = vld [vmem:[#allocation5 + $0x10] sm:$0xff]
          %v1395 = vld [vmem:[#allocation5 + $0x18] sm:$0xff]
          %v1396 = vld [vmem:[#allocation5 + $0x20] sm:$0xff]
          %v1397 = vld [vmem:[#allocation5 + $0x28] sm:$0xff]
          %v1398 = vld [vmem:[#allocation5 + $0x30] sm:$0xff]
          %v1399 = vld [vmem:[#allocation5 + $0x38] sm:$0xff]
          %v1400 = vld [vmem:[#allocation5 + $0x40] sm:$0xff]
          %v1401 = vld [vmem:[#allocation5 + $0x48] sm:$0xff]
          %v1402 = vld [vmem:[#allocation5 + $0x50] sm:$0xff]
          %v1403 = vld [vmem:[#allocation5 + $0x58] sm:$0xff]
          %v1404 = vld [vmem:[#allocation5 + $0x60] sm:$0xff]
          %v1405 = vld [vmem:[#allocation5 + $0x68] sm:$0xff]
          %v1406 = vld [vmem:[#allocation5 + $0x70] sm:$0xff]
          %v1407 = vld [vmem:[#allocation5 + $0x78] sm:$0xff]
          %v1408 = vadd.f32 %v1392, %v1393
          %v1409 = vadd.f32 %v1408, %v1394
          %v1410 = vadd.f32 %v1409, %v1395
          %v1411 = vadd.f32 %v1410, %v1396
          %v1412 = vadd.f32 %v1411, %v1397
          %v1413 = vadd.f32 %v1412, %v1398
          %v1414 = vadd.f32 %v1413, %v1399
          %v1415 = vadd.f32 %v1414, %v1400
          %v1416 = vadd.f32 %v1415, %v1401
          %v1417 = vadd.f32 %v1416, %v1402
          %v1418 = vadd.f32 %v1417, %v1403
          %v1419 = vadd.f32 %v1418, %v1404
          %v1420 = vadd.f32 %v1419, %v1405
          %v1421 = vadd.f32 %v1420, %v1406
          %v1422 = vadd.f32 %v1421, %v1407
          %1423 = vadd.xlane.f32.xlu0 %v1422
          %v1424 = vpop.xlane.xlu0 %1423
          %v1425 = vrot.slane %v1424, 4
          %v1426 = vadd.f32 %v1424, %v1425
          %v1427 = vrot.slane %v1426, 2
          %v1428 = vadd.f32 %v1426, %v1427
          %v1429 = vrot.slane %v1428, 1
          %v1430 = vadd.f32 %v1428, %v1429
          %s1431 = vtos %v1430
          %v1432 = vlaneseq
          %v1433 = vshrl.u32 %v1432, 7
          %v1434 = vlaneseq
          %v1435 = vand.u32 %v1434, 127
          %vm1436 = vcmp.eq.s32.totalorder %v1433, 0
          %vm1437 = vcmp.eq.s32.totalorder %v1435, 0
          %vm1438 = vmand %vm1436, %vm1437
          %v1439 = vstv %s1311
          %v1440 = vsel %vm1438, %v1439, 0.0
          %vm1441 = vcmp.eq.s32.totalorder %v1435, 1
          %vm1442 = vmand %vm1436, %vm1441
          %v1443 = vstv %s1351
          %v1444 = vsel %vm1442, %v1443, %v1440
          %vm1445 = vcmp.eq.s32.totalorder %v1435, 2
          %vm1446 = vmand %vm1436, %vm1445
          %v1447 = vstv %s1391
          %v1448 = vsel %vm1446, %v1447, %v1444
          %vm1449 = vcmp.eq.s32.totalorder %v1435, 3
          %vm1450 = vmand %vm1436, %vm1449
          %v1451 = vstv %s1431
          %v1452 = vsel %vm1450, %v1451, %v1448
          %1453 = vst [vmem:[%s471] sm:$0xff] %v1452
        $region64: #{tpu_custom_call.1} parent=43 // pred_fallthru
          _
        %s1454 = sand.u32 %s229, 1
        %s1455 = scalar_lea.sflag [#allocation8], %s1454
        %s1456 = sand.u32 %s229, 1
        %s1457 = smul.addr %s1456, 8
        %s1458 = scalar_lea.vmem [#allocation12], %s1457
        // Predicated region
        $region65: #{tpu_custom_call.1} parent=43 // pred_check
          %p1459 = pneg %p239
        $region66: #{tpu_custom_call.1} parent=43 // pred_check_branch
          %1461 = sbr.rel (%p1459) target = $region68
        $region67: #{tpu_custom_call.1} parent=43 // pred_region
          %1463 = vsyncadd %s1455, 0
          %s1464 = smul.addr %s31, 8
          %s1465 = scalar_lea.hbm %s6, %s1464
          %s1467 = sshll.u32 %s1458, 4
          %s1468 = int_to_ptr.vmem [resolvable:$true] %s1467
          %s1469 = sshll.u32 %s1465, 4
          %s1470 = int_to_ptr.hbm [resolvable:$true] %s1469
          %1472 = dma.vmem_to_hbm [thread:$0]  %s1468, 128, %s1470, %s1455
        $region68: #{tpu_custom_call.1} parent=43 // pred_fallthru
          _
      $region44: #{tpu_custom_call.1} parent=5 // pred_fallthru
        _
      %p1473 = scmp.le.s32.totalorder 2, %s21
      // Predicated region
      $region69: #{tpu_custom_call.1} parent=5 // pred_check
        %p1474 = pneg %p1473
      $region70: #{tpu_custom_call.1} parent=5 // pred_check_branch
        %1476 = sbr.rel (%p1474) target = $region72
      $region71: #{tpu_custom_call.1} parent=5 // pred_region
        %s1477 = ssub.s32 %s21, 2
        // Predicated region
        $region73: #{tpu_custom_call.1} parent=71 // pred_check
          %p1478 = pneg %p245
        $region74: #{tpu_custom_call.1} parent=71 // pred_check_branch
          %1480 = sbr.rel (%p1478) target = $region76
        $region75: #{tpu_custom_call.1} parent=71 // pred_region
          %s1481 = sand.u32 %s230, 1
          %s1482 = scalar_lea.sflag [#allocation8], %s1481
          %s1483 = sand.u32 %s230, 1
          %s1484 = smul.addr %s1483, 8
          %s1485 = scalar_lea.vmem [#allocation12], %s1484
          %1487 = dma.done %s1482, 128
        $region76: #{tpu_custom_call.1} parent=71 // pred_fallthru
          _
      $region72: #{tpu_custom_call.1} parent=5 // pred_fallthru
        _
    $region6: #{tpu_custom_call.1} parent=1 // loop_footer
      %s25 = sadd.s32 1, %s21
    $region7: #{tpu_custom_call.1} parent=1 // loop_footer_branch
      %20 = sbr.rel target = $region3
    $region8: #{tpu_custom_call.1} parent=1 // loop_exit
      _
    %1488 = vsyncpa [#allocation7], 1
    %s1489 = scalar_lea.sflag [#allocation7], 1
    %1490 = vsyncpa %s1489, 1
    %1491 = vsyncpa [#allocation10], 1
    %s1492 = scalar_lea.sflag [#allocation10], 1
    %1493 = vsyncpa %s1492, 1
    %1494 = vsyncpa [#allocation8], 1
    %s1495 = scalar_lea.sflag [#allocation8], 1
    %1496 = vsyncpa %s1495, 1

</llo_original>
